<compile_context>
chip_gen: v7x
topology: tpu7x:2x2x1
jax: 0.10.0
libtpu: 0.0.40
codegen_flags: <defaults>
</compile_context>

<pallas_src>
import functools

import numpy as np

import jax
import jax.numpy as jnp
from jax.experimental import pallas as pl
from jax.experimental.pallas import tpu as pltpu


_VMEM_LIMIT = 48 * 1024 * 1024    # explicit scoped-VMEM limit (valid on v7x's 64 MiB too)
_VMEM_BUDGET = 40 * 1024 * 1024   # target working set (headroom under the limit)
_RESIDENT_BYTES = 8 * 1024 * 1024  # keep the RHS fully VMEM-resident below this size
_TM_PREF = 1024                   # output row tile
_TK_PREF = 2048                   # adjacency column (reduction) tile
_TN_PREF = 1024                   # output column tile for H @ H^T


def _round_up(x, m):
    return ((x + m - 1) // m) * m


def _pick_tile(n, pref):
    """Largest 128-multiple tile <= pref that divides n (n is a multiple of 128)."""
    t = min(pref, n)
    while n % t:
        t //= 2
    return max(t, 128)


# -------------------- kernel 0: feature transform  XW = X @ W -------------------- #
def _linear_kernel(x_ref, w_ref, o_ref):
    o_ref[...] = jnp.dot(x_ref[...], w_ref[...],
                         preferred_element_type=jnp.float32).astype(o_ref.dtype)


def linear(x_p, w_p, out_dtype):
    """XW = X @ W on padded inputs: x_p [Np, Fi], w_p [Fi, Fo] -> [Np, Fo] (out_dtype)."""
    n_pad, fin = x_p.shape
    fout = w_p.shape[1]
    out_sz = np.dtype(out_dtype).itemsize
    x_sz = x_p.dtype.itemsize

    tm = _pick_tile(n_pad, _TM_PREF)

    def budget(tm_):
        return (2 * tm_ * fin * x_sz          # X tile (double-buffered)
                + 2 * fin * fout * 4          # W (resident, 2 bufs)
                + 2 * tm_ * fout * out_sz)    # out tile (double-buffered)

    while budget(tm) > _VMEM_BUDGET and tm > 128:
        tm //= 2

    cost = pl.CostEstimate(
        flops=2 * n_pad * fin * fout,
        transcendentals=0,
        bytes_accessed=(n_pad * fin * x_sz + fin * fout * 4 + n_pad * fout * out_sz),
    )

    return pl.pallas_call(
        _linear_kernel,
        out_shape=jax.ShapeDtypeStruct((n_pad, fout), out_dtype),
        grid_spec=pltpu.PrefetchScalarGridSpec(
            num_scalar_prefetch=0,
            grid=(n_pad // tm,),
            in_specs=[
                pl.BlockSpec((tm, fin), lambda i: (i, 0)),
                pl.BlockSpec((fin, fout), lambda i: (0, 0)),   # resident weight
            ],
            out_specs=pl.BlockSpec((tm, fout), lambda i: (i, 0)),
        ),
        compiler_params=pltpu.CompilerParams(
            dimension_semantics=("parallel",),
            vmem_limit_bytes=_VMEM_LIMIT,
        ),
        cost_estimate=cost,
    )(x_p, w_p)


# ----------------- kernel 1: propagation  H = relu(A_norm @ XW + b) ----------------- #
def _propagate_kernel(adj_ref, xw_ref, b_ref, out_ref, acc_ref, *, xw_resident, tk):
    """Grid = (i parallel, k reduction).  acc (tm, fout) in f32."""
    k = pl.program_id(1)

    @pl.when(k == 0)
    def _init():
        acc_ref[...] = jnp.zeros_like(acc_ref)

    a = adj_ref[...]                               # (tm, tk) in compute dtype
    if xw_resident:
        start = pl.multiple_of(k * tk, tk)         # slice the resident XW, no re-DMA
        xb = xw_ref[pl.ds(start, tk), :]
    else:
        xb = xw_ref[...]                           # streamed (tk, fout) block
    acc_ref[...] += jnp.dot(a, xb, preferred_element_type=jnp.float32)

    @pl.when(k == pl.num_programs(1) - 1)
    def _finalize():
        # bias + ReLU epilogue kept in f32 (v5e has no bf16 VPU); lane-dense store.
        # NOTE: padded rows (i >= n) hold relu(bias); masked by zero adjacency columns
        # downstream and dropped by the final [:n] slices.
        h = acc_ref[...] + b_ref[...]
        out_ref[...] = jnp.maximum(h, 0.0).astype(out_ref.dtype)


def gcn_propagate(adj_p, xw_p, b_p, out_dtype):
    """relu(A @ XW + b): adj_p [Np,Np], xw_p [Np,Fo], b_p [1,Fo] -> [Np,Fo]."""
    n_pad = adj_p.shape[0]
    fout = xw_p.shape[1]
    adj_sz = adj_p.dtype.itemsize
    xw_sz = xw_p.dtype.itemsize
    out_sz = np.dtype(out_dtype).itemsize

    tm = _pick_tile(n_pad, _TM_PREF)
    tk = _pick_tile(n_pad, _TK_PREF)
    xw_resident = n_pad * fout * xw_sz <= _RESIDENT_BYTES

    def budget(tm_, tk_):
        b = 2 * tm_ * tk_ * adj_sz                                        # adjacency tile
        b += (2 * n_pad * fout * xw_sz) if xw_resident else (2 * tk_ * fout * xw_sz)
        b += tm_ * fout * 4                                               # f32 accumulator
        b += 2 * tm_ * fout * out_sz                                      # output tile
        b += 2 * fout * 4                                                 # bias
        return b

    while budget(tm, tk) > _VMEM_BUDGET and tk > 128:
        tk //= 2
    while budget(tm, tk) > _VMEM_BUDGET and tm > 128:
        tm //= 2

    grid = (n_pad // tm, n_pad // tk)

    if xw_resident:
        # Whole XW lives in VMEM for the entire kernel (constant index_map => one DMA).
        xw_spec = pl.BlockSpec((n_pad, fout), lambda i, k: (0, 0))
    else:
        xw_spec = pl.BlockSpec((tk, fout), lambda i, k: (k, 0))

    xw_reads = 1 if xw_resident else (n_pad // tm)
    cost = pl.CostEstimate(
        flops=2 * n_pad * n_pad * fout,
        transcendentals=0,
        bytes_accessed=(n_pad * n_pad * adj_sz
                        + xw_reads * n_pad * fout * xw_sz
                        + fout * 4
                        + n_pad * fout * out_sz),
    )

    kernel = functools.partial(_propagate_kernel, xw_resident=xw_resident, tk=tk)
    return pl.pallas_call(
        kernel,
        out_shape=jax.ShapeDtypeStruct((n_pad, fout), out_dtype),
        grid_spec=pltpu.PrefetchScalarGridSpec(
            num_scalar_prefetch=0,
            grid=grid,
            in_specs=[
                pl.BlockSpec((tm, tk), lambda i, k: (i, k)),   # adjacency tile
                xw_spec,                                       # XW (resident or streamed)
                pl.BlockSpec((1, fout), lambda i, k: (0, 0)),  # bias (resident)
            ],
            out_specs=pl.BlockSpec((tm, fout), lambda i, k: (i, 0)),
            scratch_shapes=[pltpu.VMEM((tm, fout), jnp.float32)],
        ),
        compiler_params=pltpu.CompilerParams(
            dimension_semantics=("parallel", "arbitrary"),
            vmem_limit_bytes=_VMEM_LIMIT,
        ),
        cost_estimate=cost,
    )(adj_p, xw_p, b_p)


# ------------------------------ kernel 2: H @ H^T ------------------------------ #
def _hht_kernel(h_ref, ht_ref, out_ref, *, ht_resident, tn):
    if ht_resident:
        j = pl.program_id(1)
        start = pl.multiple_of(j * tn, tn)
        rhs = ht_ref[:, pl.ds(start, tn)]          # slice resident H^T, no re-DMA
    else:
        rhs = ht_ref[...]
    out_ref[...] = jnp.dot(h_ref[...], rhs,
                           preferred_element_type=jnp.float32).astype(out_ref.dtype)


def hht(h_p, ht_p, out_dtype=jnp.float32):
    """A_hat = H @ H^T on padded H [Np,F]; ht_p is the pre-transposed [F,Np] copy."""
    n_pad, f = h_p.shape
    h_sz = h_p.dtype.itemsize
    out_sz = np.dtype(out_dtype).itemsize

    tm = _pick_tile(n_pad, _TM_PREF)
    tn = _pick_tile(n_pad, _TN_PREF)
    ht_resident = f * n_pad * h_sz <= _RESIDENT_BYTES

    def budget(tm_, tn_):
        b = 2 * tm_ * f * h_sz                                            # H row block
        b += (2 * f * n_pad * h_sz) if ht_resident else (2 * f * tn_ * h_sz)
        b += 2 * tm_ * tn_ * out_sz                                       # output tile
        return b

    while budget(tm, tn) > _VMEM_BUDGET and tn > 128:
        tn //= 2
    while budget(tm, tn) > _VMEM_BUDGET and tm > 128:
        tm //= 2

    grid = (n_pad // tm, n_pad // tn)

    if ht_resident:
        ht_spec = pl.BlockSpec((f, n_pad), lambda i, j: (0, 0))
    else:
        ht_spec = pl.BlockSpec((f, tn), lambda i, j: (0, j))

    ht_reads = 1 if ht_resident else (n_pad // tm)
    cost = pl.CostEstimate(
        flops=2 * n_pad * n_pad * f,
        transcendentals=0,
        bytes_accessed=(n_pad * f * h_sz * (1 + ht_reads) + n_pad * n_pad * out_sz),
    )

    kernel = functools.partial(_hht_kernel, ht_resident=ht_resident, tn=tn)
    return pl.pallas_call(
        kernel,
        out_shape=jax.ShapeDtypeStruct((n_pad, n_pad), out_dtype),
        grid_spec=pltpu.PrefetchScalarGridSpec(
            num_scalar_prefetch=0,
            grid=grid,
            in_specs=[
                pl.BlockSpec((tm, f), lambda i, j: (i, 0)),   # H row block, resident over j
                ht_spec,                                      # H^T (resident or streamed)
            ],
            out_specs=pl.BlockSpec((tm, tn), lambda i, j: (i, j)),  # lane-dense store
        ),
        compiler_params=pltpu.CompilerParams(
            dimension_semantics=("parallel", "parallel"),
            vmem_limit_bytes=_VMEM_LIMIT,
        ),
        cost_estimate=cost,
    )(h_p, ht_p)


# ------------------------------ Dominant forward ------------------------------ #
def dominant_forward(x, edge_index, params, *, compute_dtype=jnp.bfloat16):
    """Dominant.forward: returns (A_hat [N,N], X_hat [N,nfeat]). Eval mode (dropout=id).

    compute_dtype controls the dtype of the dense N^2 adjacency operand, XW and the
    intermediate H arrays (the kernels are HBM-bound, so bf16 is the default);
    accumulation and the bias/ReLU epilogue stay in f32.
    """
    n, nfeat = x.shape

    # ---- plain-JAX glue: dense symmetric GCN normalization from edge_index (2, E) ----
    src, dst = edge_index[0], edge_index[1]
    adj = jnp.zeros((n, n), jnp.float32)
    adj = adj.at[src, dst].set(1.0).at[dst, src].set(1.0)     # undirected, all weights 1
    adj = adj + jnp.eye(n, dtype=jnp.float32)                 # self loops
    deg = jnp.sum(adj, axis=1)
    d_inv_sqrt = jnp.where(deg > 0, jax.lax.rsqrt(deg), 0.0)
    adj_norm = adj * d_inv_sqrt[:, None] * d_inv_sqrt[None, :]

    # ---- pad N and feature dims to multiples of 128 (lane-dense tiles & stores) ----
    nhid = params["w_enc1"].shape[1]
    n_pad = _round_up(max(n, 128), 128)
    f_pad = _round_up(max(nfeat, 128), 128)
    h_pad = _round_up(max(nhid, 128), 128)

    adj_p = jnp.zeros((n_pad, n_pad), jnp.float32).at[:n, :n].set(adj_norm)
    adj_p = adj_p.astype(compute_dtype)   # bf16 halves HBM bytes of the dominant operand
    x_p = jnp.zeros((n_pad, f_pad), jnp.float32).at[:n, :nfeat].set(x.astype(jnp.float32))

    def pad_w(w, fi, fo):
        return jnp.zeros((fi, fo), jnp.float32).at[: w.shape[0], : w.shape[1]].set(w)

    def pad_b(b, fo):
        return jnp.zeros((1, fo), jnp.float32).at[0, : b.shape[0]].set(b)

    w1, b1 = pad_w(params["w_enc1"], f_pad, h_pad), pad_b(params["b_enc1"], h_pad)
    w2, b2 = pad_w(params["w_enc2"], h_pad, h_pad), pad_b(params["b_enc2"], h_pad)
    w3, b3 = pad_w(params["w_attr1"], h_pad, h_pad), pad_b(params["b_attr1"], h_pad)
    w4, b4 = pad_w(params["w_attr2"], h_pad, f_pad), pad_b(params["b_attr2"], f_pad)
    w5, b5 = pad_w(params["w_struct"], h_pad, h_pad), pad_b(params["b_struct"], h_pad)

    def gcn(h_in, w, b):
        # associativity hoist: XW = H @ W first (tiny), then the N^2 kernel does A @ XW
        # with RHS/accumulator width fout (cast to compute_dtype in the wrapper).
        xw = linear(h_in, w, compute_dtype)
        return gcn_propagate(adj_p, xw, b, compute_dtype)

    # ---- shared encoder ----
    h1 = gcn(x_p, w1, b1)
    z = gcn(h1, w2, b2)

    # ---- fused first layers of both decoders (attr.gc1 and struct.gc1 share adj and z):
    #      one propagation pass with a 2*h_pad-wide epilogue, then split.
    w35 = jnp.concatenate([w3, w5], axis=1)    # (h_pad, 2*h_pad)
    b35 = jnp.concatenate([b3, b5], axis=1)    # (1, 2*h_pad)
    a1s1 = gcn(z, w35, b35)                    # (n_pad, 2*h_pad)
    a1 = a1s1[:, :h_pad]
    s1 = a1s1[:, h_pad:]

    # ---- attribute decoder second layer ----
    x_hat_p = gcn(a1, w4, b4)

    # ---- structure decoder: A_hat = s1 @ s1^T (RHS pre-transposed outside, cheap [F,Np]) ----
    a_hat_p = hht(s1, s1.T, jnp.float32)

    return a_hat_p[:n, :n], x_hat_p[:n, :nfeat].astype(jnp.float32)


# ------------------------------ pure-JAX reference ----------------------------- #
def dominant_reference(x, edge_index, params):
    n = x.shape[0]
    src, dst = edge_index[0], edge_index[1]
    adj = jnp.zeros((n, n), jnp.float32).at[src, dst].set(1.0).at[dst, src].set(1.0)
    adj = adj + jnp.eye(n, dtype=jnp.float32)
    deg = jnp.sum(adj, axis=1)
    d = jnp.where(deg > 0, 1.0 / jnp.sqrt(deg), 0.0)
    adjn = adj * d[:, None] * d[None, :]

    mm = functools.partial(jnp.matmul, precision=jax.lax.Precision.HIGHEST)

    def gcn(h, w, b):
        return jnp.maximum(mm(adjn, mm(h, w)) + b[None, :], 0.0)

    h1 = gcn(x, params["w_enc1"], params["b_enc1"])
    z = gcn(h1, params["w_enc2"], params["b_enc2"])
    a1 = gcn(z, params["w_attr1"], params["b_attr1"])
    x_hat = gcn(a1, params["w_attr2"], params["b_attr2"])
    s1 = gcn(z, params["w_struct"], params["b_struct"])
    a_hat = mm(s1, s1.T)
    return a_hat, x_hat


# ------------------------------------ main ------------------------------------- #
if __name__ == "__main__":
    N = 16        # nodes
    NFEAT = 64    # input feature dim
    NHID = 32     # hidden dim

    key = jax.random.PRNGKey(0)
    keys = jax.random.split(key, 11)

    x = jax.random.normal(keys[0], (N, NFEAT), dtype=jnp.float32)

    def mk_w(k, fi, fo):
        return jax.random.normal(k, (fi, fo), dtype=jnp.float32) / jnp.sqrt(fi)

    def mk_b(k, fo):
        return jax.random.normal(k, (fo,), dtype=jnp.float32) * 0.01

    params = {
        "w_enc1": mk_w(keys[1], NFEAT, NHID), "b_enc1": mk_b(keys[2], NHID),
        "w_enc2": mk_w(keys[3], NHID, NHID),  "b_enc2": mk_b(keys[4], NHID),
        "w_attr1": mk_w(keys[5], NHID, NHID), "b_attr1": mk_b(keys[6], NHID),
        "w_attr2": mk_w(keys[7], NHID, NFEAT), "b_attr2": mk_b(keys[8], NFEAT),
        "w_struct": mk_w(keys[9], NHID, NHID), "b_struct": mk_b(keys[10], NHID),
    }

    # deterministic ring graph, edge_index shape (2, E)
    src = jnp.arange(N, dtype=jnp.int32)
    dst = (src + 1) % N
    edge_index = jnp.stack([src, dst], axis=0)

    fwd = jax.jit(dominant_forward, static_argnames="compute_dtype")

    a_ref, x_ref = dominant_reference(x, edge_index, params)

    # f32 MXU-input path (tight check)
    a_hat, x_hat = fwd(x, edge_index, params, compute_dtype=jnp.float32)
    a_hat, x_hat = jax.block_until_ready((a_hat, x_hat))
    assert a_hat.shape == (N, N) and x_hat.shape == (N, NFEAT)
    assert jnp.allclose(a_hat, a_ref, atol=3e-2, rtol=3e-2), "A_hat mismatch (f32 path)"
    assert jnp.allclose(x_hat, x_ref, atol=3e-2, rtol=3e-2), "X_hat mismatch (f32 path)"

    # bf16 path (default; halves HBM traffic of the dense N^2 operands; loose check)
    a_hat_bf, x_hat_bf = fwd(x, edge_index, params, compute_dtype=jnp.bfloat16)
    a_hat_bf, x_hat_bf = jax.block_until_ready((a_hat_bf, x_hat_bf))
    assert jnp.allclose(a_hat_bf, a_ref, atol=0.2, rtol=0.2), "A_hat mismatch (bf16 path)"
    assert jnp.allclose(x_hat_bf, x_ref, atol=0.2, rtol=0.2), "X_hat mismatch (bf16 path)"

    print("KERNEL_OK")
</pallas_src>

<mosaic_0001>
module attributes {stable_mosaic.version = 11 : i64} {
  func.func @_linear_kernel(%arg0: i32, %arg1: memref<128x128xf32, #tpu.memory_space<vmem>>, %arg2: memref<128x128xf32, #tpu.memory_space<vmem>>, %arg3: memref<128x128xf32, #tpu.memory_space<vmem>>) attributes {dimension_semantics = [#tpu.dimension_semantics<parallel>], iteration_bounds = array<i64: 1>, scalar_prefetch = 0 : i64, scratch_operands = 0 : i64, tpu.core_type = #tpu.core_type<tc>, window_params = [{transform_indices = @transform_0, window_bounds = array<i64: 128, 128>}, {pipeline_mode = #tpu.pipeline_mode<synchronous>, transform_indices = @transform_1, window_bounds = array<i64: 128, 128>}, {transform_indices = @transform_2, window_bounds = array<i64: 128, 128>}]} {
    %c0 = arith.constant 0 : index
    %c0_0 = arith.constant 0 : index
    %0 = vector.load %arg1[%c0, %c0_0] : memref<128x128xf32, #tpu.memory_space<vmem>>, vector<128x128xf32>
    %c0_1 = arith.constant 0 : index
    %c0_2 = arith.constant 0 : index
    %1 = vector.load %arg2[%c0_1, %c0_2] : memref<128x128xf32, #tpu.memory_space<vmem>>, vector<128x128xf32>
    %cst = arith.constant dense<0.000000e+00> : vector<128x128xf32>
    %2 = tpu.matmul %0, %1, %cst {dimension_numbers = #tpu.dot_dimension_numbers<[1], [0], [0], [1], [0, 0, 1, 1], [], []>} : vector<128x128xf32>, vector<128x128xf32>, vector<128x128xf32> -> vector<128x128xf32>
    %c0_3 = arith.constant 0 : index
    %c0_4 = arith.constant 0 : index
    %3 = vector.load %arg3[%c0_3, %c0_4] : memref<128x128xf32, #tpu.memory_space<vmem>>, vector<128x128xf32>
    tpu.vector_store %arg3[%c0_3, %c0_4], %2 {strides = array<i32>} : memref<128x128xf32, #tpu.memory_space<vmem>>, vector<128x128xf32>,
    return
  }
  func.func @transform_0(%arg0: i32) -> (i32, i32) {
    %c0_i32 = arith.constant 0 : i32
    %c0_i32_0 = arith.constant 0 : i32
    return %arg0, %c0_i32 : i32, i32
  }
  func.func @transform_1(%arg0: i32) -> (i32, i32) {
    %c0_i32 = arith.constant 0 : i32
    %c0_i32_0 = arith.constant 0 : i32
    %c0_i32_1 = arith.constant 0 : i32
    return %c0_i32, %c0_i32_0 : i32, i32
  }
  func.func @transform_2(%arg0: i32) -> (i32, i32) {
    %c0_i32 = arith.constant 0 : i32
    %c0_i32_0 = arith.constant 0 : i32
    return %arg0, %c0_i32 : i32, i32
  }
}

module attributes {stable_mosaic.version = 11 : i64} {
  func.func @_propagate_kernel(%arg0: i32, %arg1: i32, %arg2: memref<128x128xf32, #tpu.memory_space<vmem>>, %arg3: memref<128x128xf32, #tpu.memory_space<vmem>>, %arg4: memref<1x128xf32, #tpu.memory_space<vmem>>, %arg5: memref<128x128xf32, #tpu.memory_space<vmem>>, %arg6: memref<128x128xf32, #tpu.memory_space<vmem>>) attributes {dimension_semantics = [#tpu.dimension_semantics<parallel>, #tpu.dimension_semantics<arbitrary>], iteration_bounds = array<i64: 1, 1>, scalar_prefetch = 0 : i64, scratch_operands = 1 : i64, tpu.core_type = #tpu.core_type<tc>, window_params = [{transform_indices = @transform_0, window_bounds = array<i64: 128, 128>}, {pipeline_mode = #tpu.pipeline_mode<synchronous>, transform_indices = @transform_1, window_bounds = array<i64: 128, 128>}, {pipeline_mode = #tpu.pipeline_mode<synchronous>, transform_indices = @transform_2, window_bounds = array<i64: 1, 128>}, {transform_indices = @transform_3, window_bounds = array<i64: 128, 128>}]} {
    %c0_i32 = arith.constant 0 : i32
    %0 = arith.cmpi eq, %arg1, %c0_i32 : i32
    %1 = arith.extui %0 : i1 to i32
    %c0_i32_0 = arith.constant 0 : i32
    %2 = arith.cmpi ne, %1, %c0_i32_0 : i32
    scf.if %2 {
      %cst_9 = arith.constant 0.000000e+00 : f32
      %15 = vector.broadcast %cst_9 : f32 to vector<128x128xf32>
      %c0_10 = arith.constant 0 : index
      %c0_11 = arith.constant 0 : index
      %16 = vector.load %arg6[%c0_10, %c0_11] : memref<128x128xf32, #tpu.memory_space<vmem>>, vector<128x128xf32>
      tpu.vector_store %arg6[%c0_10, %c0_11], %15 {strides = array<i32>} : memref<128x128xf32, #tpu.memory_space<vmem>>, vector<128x128xf32>,
    } else {
    }
    %c0 = arith.constant 0 : index
    %c0_1 = arith.constant 0 : index
    %3 = vector.load %arg2[%c0, %c0_1] : memref<128x128xf32, #tpu.memory_space<vmem>>, vector<128x128xf32>
    %c128_i32 = arith.constant 128 : i32
    %4 = arith.muli %arg1, %c128_i32 : i32
    %5 = tpu.assume_multiple %4, 128 : i32
    %6 = arith.index_cast %5 : i32 to index
    %c0_2 = arith.constant 0 : index
    %7 = vector.load %arg3[%6, %c0_2] : memref<128x128xf32, #tpu.memory_space<vmem>>, vector<128x128xf32>
    %c0_3 = arith.constant 0 : index
    %c0_4 = arith.constant 0 : index
    %8 = vector.load %arg6[%c0_3, %c0_4] : memref<128x128xf32, #tpu.memory_space<vmem>>, vector<128x128xf32>
    %cst = arith.constant dense<0.000000e+00> : vector<128x128xf32>
    %9 = tpu.matmul %3, %7, %cst {dimension_numbers = #tpu.dot_dimension_numbers<[1], [0], [0], [1], [0, 0, 1, 1], [], []>} : vector<128x128xf32>, vector<128x128xf32>, vector<128x128xf32> -> vector<128x128xf32>
    %10 = arith.addf %8, %9 : vector<128x128xf32>
    %c0_5 = arith.constant 0 : index
    %c0_6 = arith.constant 0 : index
    %11 = vector.load %arg6[%c0_5, %c0_6] : memref<128x128xf32, #tpu.memory_space<vmem>>, vector<128x128xf32>
    tpu.vector_store %arg6[%c0_5, %c0_6], %10 {strides = array<i32>} : memref<128x128xf32, #tpu.memory_space<vmem>>, vector<128x128xf32>,
    %c0_i32_7 = arith.constant 0 : i32
    %12 = arith.cmpi eq, %arg1, %c0_i32_7 : i32
    %13 = arith.extui %12 : i1 to i32
    %c0_i32_8 = arith.constant 0 : i32
    %14 = arith.cmpi ne, %13, %c0_i32_8 : i32
    scf.if %14 {
      %c0_9 = arith.constant 0 : index
      %c0_10 = arith.constant 0 : index
      %15 = vector.load %arg6[%c0_9, %c0_10] : memref<128x128xf32, #tpu.memory_space<vmem>>, vector<128x128xf32>
      %c0_11 = arith.constant 0 : index
      %c0_12 = arith.constant 0 : index
      %16 = vector.load %arg4[%c0_11, %c0_12] : memref<1x128xf32, #tpu.memory_space<vmem>>, vector<1x128xf32>
      %17 = vector.broadcast %16 : vector<1x128xf32> to vector<128x128xf32>
      %18 = arith.addf %15, %17 : vector<128x128xf32>
      %cst_13 = arith.constant 0.000000e+00 : f32
      %19 = vector.broadcast %cst_13 : f32 to vector<128x128xf32>
      %20 = arith.maximumf %18, %19 : vector<128x128xf32>
      %c0_14 = arith.constant 0 : index
      %c0_15 = arith.constant 0 : index
      %21 = vector.load %arg5[%c0_14, %c0_15] : memref<128x128xf32, #tpu.memory_space<vmem>>, vector<128x128xf32>
      tpu.vector_store %arg5[%c0_14, %c0_15], %20 {strides = array<i32>} : memref<128x128xf32, #tpu.memory_space<vmem>>, vector<128x128xf32>,
    } else {
    }
    return
  }
  func.func @transform_0(%arg0: i32, %arg1: i32) -> (i32, i32) {
    %c0_i32 = arith.constant 0 : i32
    return %arg0, %arg1 : i32, i32
  }
  func.func @transform_1(%arg0: i32, %arg1: i32) -> (i32, i32) {
    %c0_i32 = arith.constant 0 : i32
    %c0_i32_0 = arith.constant 0 : i32
    %c0_i32_1 = arith.constant 0 : i32
    return %c0_i32, %c0_i32_0 : i32, i32
  }
  func.func @transform_2(%arg0: i32, %arg1: i32) -> (i32, i32) {
    %c0_i32 = arith.constant 0 : i32
    %c0_i32_0 = arith.constant 0 : i32
    %c0_i32_1 = arith.constant 0 : i32
    return %c0_i32, %c0_i32_0 : i32, i32
  }
  func.func @transform_3(%arg0: i32, %arg1: i32) -> (i32, i32) {
    %c0_i32 = arith.constant 0 : i32
    %c0_i32_0 = arith.constant 0 : i32
    return %arg0, %c0_i32 : i32, i32
  }
}

module attributes {stable_mosaic.version = 11 : i64} {
  func.func @_linear_kernel(%arg0: i32, %arg1: memref<128x128xf32, #tpu.memory_space<vmem>>, %arg2: memref<128x256xf32, #tpu.memory_space<vmem>>, %arg3: memref<128x256xf32, #tpu.memory_space<vmem>>) attributes {dimension_semantics = [#tpu.dimension_semantics<parallel>], iteration_bounds = array<i64: 1>, scalar_prefetch = 0 : i64, scratch_operands = 0 : i64, tpu.core_type = #tpu.core_type<tc>, window_params = [{transform_indices = @transform_0, window_bounds = array<i64: 128, 128>}, {pipeline_mode = #tpu.pipeline_mode<synchronous>, transform_indices = @transform_1, window_bounds = array<i64: 128, 256>}, {transform_indices = @transform_2, window_bounds = array<i64: 128, 256>}]} {
    %c0 = arith.constant 0 : index
    %c0_0 = arith.constant 0 : index
    %0 = vector.load %arg1[%c0, %c0_0] : memref<128x128xf32, #tpu.memory_space<vmem>>, vector<128x128xf32>
    %c0_1 = arith.constant 0 : index
    %c0_2 = arith.constant 0 : index
    %1 = vector.load %arg2[%c0_1, %c0_2] : memref<128x256xf32, #tpu.memory_space<vmem>>, vector<128x256xf32>
    %cst = arith.constant dense<0.000000e+00> : vector<128x256xf32>
    %2 = tpu.matmul %0, %1, %cst {dimension_numbers = #tpu.dot_dimension_numbers<[1], [0], [0], [1], [0, 0, 1, 1], [], []>} : vector<128x128xf32>, vector<128x256xf32>, vector<128x256xf32> -> vector<128x256xf32>
    %c0_3 = arith.constant 0 : index
    %c0_4 = arith.constant 0 : index
    %3 = vector.load %arg3[%c0_3, %c0_4] : memref<128x256xf32, #tpu.memory_space<vmem>>, vector<128x256xf32>
    tpu.vector_store %arg3[%c0_3, %c0_4], %2 {strides = array<i32>} : memref<128x256xf32, #tpu.memory_space<vmem>>, vector<128x256xf32>,
    return
  }
  func.func @transform_0(%arg0: i32) -> (i32, i32) {
    %c0_i32 = arith.constant 0 : i32
    %c0_i32_0 = arith.constant 0 : i32
    return %arg0, %c0_i32 : i32, i32
  }
  func.func @transform_1(%arg0: i32) -> (i32, i32) {
    %c0_i32 = arith.constant 0 : i32
    %c0_i32_0 = arith.constant 0 : i32
    %c0_i32_1 = arith.constant 0 : i32
    return %c0_i32, %c0_i32_0 : i32, i32
  }
  func.func @transform_2(%arg0: i32) -> (i32, i32) {
    %c0_i32 = arith.constant 0 : i32
    %c0_i32_0 = arith.constant 0 : i32
    return %arg0, %c0_i32 : i32, i32
  }
}

module attributes {stable_mosaic.version = 11 : i64} {
  func.func @_propagate_kernel(%arg0: i32, %arg1: i32, %arg2: memref<128x128xf32, #tpu.memory_space<vmem>>, %arg3: memref<128x256xf32, #tpu.memory_space<vmem>>, %arg4: memref<1x256xf32, #tpu.memory_space<vmem>>, %arg5: memref<128x256xf32, #tpu.memory_space<vmem>>, %arg6: memref<128x256xf32, #tpu.memory_space<vmem>>) attributes {dimension_semantics = [#tpu.dimension_semantics<parallel>, #tpu.dimension_semantics<arbitrary>], iteration_bounds = array<i64: 1, 1>, scalar_prefetch = 0 : i64, scratch_operands = 1 : i64, tpu.core_type = #tpu.core_type<tc>, window_params = [{transform_indices = @transform_0, window_bounds = array<i64: 128, 128>}, {pipeline_mode = #tpu.pipeline_mode<synchronous>, transform_indices = @transform_1, window_bounds = array<i64: 128, 256>}, {pipeline_mode = #tpu.pipeline_mode<synchronous>, transform_indices = @transform_2, window_bounds = array<i64: 1, 256>}, {transform_indices = @transform_3, window_bounds = array<i64: 128, 256>}]} {
    %c0_i32 = arith.constant 0 : i32
    %0 = arith.cmpi eq, %arg1, %c0_i32 : i32
    %1 = arith.extui %0 : i1 to i32
    %c0_i32_0 = arith.constant 0 : i32
    %2 = arith.cmpi ne, %1, %c0_i32_0 : i32
    scf.if %2 {
      %cst_9 = arith.constant 0.000000e+00 : f32
      %15 = vector.broadcast %cst_9 : f32 to vector<128x256xf32>
      %c0_10 = arith.constant 0 : index
      %c0_11 = arith.constant 0 : index
      %16 = vector.load %arg6[%c0_10, %c0_11] : memref<128x256xf32, #tpu.memory_space<vmem>>, vector<128x256xf32>
      tpu.vector_store %arg6[%c0_10, %c0_11], %15 {strides = array<i32>} : memref<128x256xf32, #tpu.memory_space<vmem>>, vector<128x256xf32>,
    } else {
    }
    %c0 = arith.constant 0 : index
    %c0_1 = arith.constant 0 : index
    %3 = vector.load %arg2[%c0, %c0_1] : memref<128x128xf32, #tpu.memory_space<vmem>>, vector<128x128xf32>
    %c128_i32 = arith.constant 128 : i32
    %4 = arith.muli %arg1, %c128_i32 : i32
    %5 = tpu.assume_multiple %4, 128 : i32
    %6 = arith.index_cast %5 : i32 to index
    %c0_2 = arith.constant 0 : index
    %7 = vector.load %arg3[%6, %c0_2] : memref<128x256xf32, #tpu.memory_space<vmem>>, vector<128x256xf32>
    %c0_3 = arith.constant 0 : index
    %c0_4 = arith.constant 0 : index
    %8 = vector.load %arg6[%c0_3, %c0_4] : memref<128x256xf32, #tpu.memory_space<vmem>>, vector<128x256xf32>
    %cst = arith.constant dense<0.000000e+00> : vector<128x256xf32>
    %9 = tpu.matmul %3, %7, %cst {dimension_numbers = #tpu.dot_dimension_numbers<[1], [0], [0], [1], [0, 0, 1, 1], [], []>} : vector<128x128xf32>, vector<128x256xf32>, vector<128x256xf32> -> vector<128x256xf32>
    %10 = arith.addf %8, %9 : vector<128x256xf32>
    %c0_5 = arith.constant 0 : index
    %c0_6 = arith.constant 0 : index
    %11 = vector.load %arg6[%c0_5, %c0_6] : memref<128x256xf32, #tpu.memory_space<vmem>>, vector<128x256xf32>
    tpu.vector_store %arg6[%c0_5, %c0_6], %10 {strides = array<i32>} : memref<128x256xf32, #tpu.memory_space<vmem>>, vector<128x256xf32>,
    %c0_i32_7 = arith.constant 0 : i32
    %12 = arith.cmpi eq, %arg1, %c0_i32_7 : i32
    %13 = arith.extui %12 : i1 to i32
    %c0_i32_8 = arith.constant 0 : i32
    %14 = arith.cmpi ne, %13, %c0_i32_8 : i32
    scf.if %14 {
      %c0_9 = arith.constant 0 : index
      %c0_10 = arith.constant 0 : index
      %15 = vector.load %arg6[%c0_9, %c0_10] : memref<128x256xf32, #tpu.memory_space<vmem>>, vector<128x256xf32>
      %c0_11 = arith.constant 0 : index
      %c0_12 = arith.constant 0 : index
      %16 = vector.load %arg4[%c0_11, %c0_12] : memref<1x256xf32, #tpu.memory_space<vmem>>, vector<1x256xf32>
      %17 = vector.broadcast %16 : vector<1x256xf32> to vector<128x256xf32>
      %18 = arith.addf %15, %17 : vector<128x256xf32>
      %cst_13 = arith.constant 0.000000e+00 : f32
      %19 = vector.broadcast %cst_13 : f32 to vector<128x256xf32>
      %20 = arith.maximumf %18, %19 : vector<128x256xf32>
      %c0_14 = arith.constant 0 : index
      %c0_15 = arith.constant 0 : index
      %21 = vector.load %arg5[%c0_14, %c0_15] : memref<128x256xf32, #tpu.memory_space<vmem>>, vector<128x256xf32>
      tpu.vector_store %arg5[%c0_14, %c0_15], %20 {strides = array<i32>} : memref<128x256xf32, #tpu.memory_space<vmem>>, vector<128x256xf32>,
    } else {
    }
    return
  }
  func.func @transform_0(%arg0: i32, %arg1: i32) -> (i32, i32) {
    %c0_i32 = arith.constant 0 : i32
    return %arg0, %arg1 : i32, i32
  }
  func.func @transform_1(%arg0: i32, %arg1: i32) -> (i32, i32) {
    %c0_i32 = arith.constant 0 : i32
    %c0_i32_0 = arith.constant 0 : i32
    %c0_i32_1 = arith.constant 0 : i32
    return %c0_i32, %c0_i32_0 : i32, i32
  }
  func.func @transform_2(%arg0: i32, %arg1: i32) -> (i32, i32) {
    %c0_i32 = arith.constant 0 : i32
    %c0_i32_0 = arith.constant 0 : i32
    %c0_i32_1 = arith.constant 0 : i32
    return %c0_i32, %c0_i32_0 : i32, i32
  }
  func.func @transform_3(%arg0: i32, %arg1: i32) -> (i32, i32) {
    %c0_i32 = arith.constant 0 : i32
    %c0_i32_0 = arith.constant 0 : i32
    return %arg0, %c0_i32 : i32, i32
  }
}

module attributes {stable_mosaic.version = 11 : i64} {
  func.func @_hht_kernel(%arg0: i32, %arg1: i32, %arg2: memref<128x128xf32, #tpu.memory_space<vmem>>, %arg3: memref<128x128xf32, #tpu.memory_space<vmem>>, %arg4: memref<128x128xf32, #tpu.memory_space<vmem>>) attributes {dimension_semantics = [#tpu.dimension_semantics<parallel>, #tpu.dimension_semantics<parallel>], iteration_bounds = array<i64: 1, 1>, scalar_prefetch = 0 : i64, scratch_operands = 0 : i64, tpu.core_type = #tpu.core_type<tc>, window_params = [{transform_indices = @transform_0, window_bounds = array<i64: 128, 128>}, {pipeline_mode = #tpu.pipeline_mode<synchronous>, transform_indices = @transform_1, window_bounds = array<i64: 128, 128>}, {transform_indices = @transform_2, window_bounds = array<i64: 128, 128>}]} {
    %c128_i32 = arith.constant 128 : i32
    %0 = arith.muli %arg1, %c128_i32 : i32
    %1 = tpu.assume_multiple %0, 128 : i32
    %c0 = arith.constant 0 : index
    %2 = arith.index_cast %1 : i32 to index
    %3 = vector.load %arg3[%c0, %2] : memref<128x128xf32, #tpu.memory_space<vmem>>, vector<128x128xf32>
    %c0_0 = arith.constant 0 : index
    %c0_1 = arith.constant 0 : index
    %4 = vector.load %arg2[%c0_0, %c0_1] : memref<128x128xf32, #tpu.memory_space<vmem>>, vector<128x128xf32>
    %cst = arith.constant dense<0.000000e+00> : vector<128x128xf32>
    %5 = tpu.matmul %4, %3, %cst {dimension_numbers = #tpu.dot_dimension_numbers<[1], [0], [0], [1], [0, 0, 1, 1], [], []>} : vector<128x128xf32>, vector<128x128xf32>, vector<128x128xf32> -> vector<128x128xf32>
    %c0_2 = arith.constant 0 : index
    %c0_3 = arith.constant 0 : index
    %6 = vector.load %arg4[%c0_2, %c0_3] : memref<128x128xf32, #tpu.memory_space<vmem>>, vector<128x128xf32>
    tpu.vector_store %arg4[%c0_2, %c0_3], %5 {strides = array<i32>} : memref<128x128xf32, #tpu.memory_space<vmem>>, vector<128x128xf32>,
    return
  }
  func.func @transform_0(%arg0: i32, %arg1: i32) -> (i32, i32) {
    %c0_i32 = arith.constant 0 : i32
    %c0_i32_0 = arith.constant 0 : i32
    return %arg0, %c0_i32 : i32, i32
  }
  func.func @transform_1(%arg0: i32, %arg1: i32) -> (i32, i32) {
    %c0_i32 = arith.constant 0 : i32
    %c0_i32_0 = arith.constant 0 : i32
    %c0_i32_1 = arith.constant 0 : i32
    return %c0_i32, %c0_i32_0 : i32, i32
  }
  func.func @transform_2(%arg0: i32, %arg1: i32) -> (i32, i32) {
    %c0_i32 = arith.constant 0 : i32
    return %arg0, %arg1 : i32, i32
  }
}

</mosaic_0001>

<llo_original>
// kernel: dominant_forward.9
$region0: #{dominant_forward.9}
  #allocation0 [shape = 'u32[]', space=smem, size = 0x4, offset = 0x4, fixed_abs, tag = 'smem constant byte address 0x4 - core index']
  #allocation1 [shape = 'u32[144,128]{1,0:T(1,128)}', space=vmem, size = 0x12000, scoped, tag = 'internal scratch']
  %s0 = inlined_call_operand.vmem [shape: f32[128,128], index: 0, kind: input, shape index: {}]
  %s1 = inlined_call_operand.vmem [shape: f32[128,128], index: 1, kind: input, shape index: {}]
  %s2 = inlined_call_operand.vmem [shape: f32[128,128], index: 2, kind: output, shape index: {}]
  %s3 = sld [smem:[#allocation0]]
  $region18: #{dominant_forward.9} parent=0
    _
  %s5 = ssub.s32 1, %s3
  %s6 = scalar_select 0, %s5, %s3
  // Predicated region
  $region2: #{dominant_forward.9} parent=0 // pred_check
    _
  $region3: #{dominant_forward.9} parent=0 // pred_check_branch
    %8 = sbr.rel (0) target = $region5
  $region4: #{dominant_forward.9} parent=0 // pred_region
    _
  $region5: #{dominant_forward.9} parent=0 // pred_fallthru
    _
  // Predicated region
  $region6: #{dominant_forward.9} parent=0 // pred_check
    _
  $region7: #{dominant_forward.9} parent=0 // pred_check_branch
    %10 = sbr.rel (0) target = $region9
  $region8: #{dominant_forward.9} parent=0 // pred_region
    _
  $region9: #{dominant_forward.9} parent=0 // pred_fallthru
    _
  %v11 = vld [vmem:[%s0] sm:$0xff]
  %v12 = vld [vmem:[%s0 + $0x8] sm:$0xff]
  %v13 = vld [vmem:[%s0 + $0x10] sm:$0xff]
  %v14 = vld [vmem:[%s0 + $0x18] sm:$0xff]
  %v15 = vld [vmem:[%s0 + $0x20] sm:$0xff]
  %v16 = vld [vmem:[%s0 + $0x28] sm:$0xff]
  %v17 = vld [vmem:[%s0 + $0x30] sm:$0xff]
  %v18 = vld [vmem:[%s0 + $0x38] sm:$0xff]
  %v19 = vld [vmem:[%s0 + $0x40] sm:$0xff]
  %v20 = vld [vmem:[%s0 + $0x48] sm:$0xff]
  %v21 = vld [vmem:[%s0 + $0x50] sm:$0xff]
  %v22 = vld [vmem:[%s0 + $0x58] sm:$0xff]
  %v23 = vld [vmem:[%s0 + $0x60] sm:$0xff]
  %v24 = vld [vmem:[%s0 + $0x68] sm:$0xff]
  %v25 = vld [vmem:[%s0 + $0x70] sm:$0xff]
  %v26 = vld [vmem:[%s0 + $0x78] sm:$0xff]
  %v27 = vld [vmem:[%s1] sm:$0xff]
  %v28 = vld [vmem:[%s1 + $0x8] sm:$0xff]
  %v29 = vld [vmem:[%s1 + $0x10] sm:$0xff]
  %v30 = vld [vmem:[%s1 + $0x18] sm:$0xff]
  %v31 = vld [vmem:[%s1 + $0x20] sm:$0xff]
  %v32 = vld [vmem:[%s1 + $0x28] sm:$0xff]
  %v33 = vld [vmem:[%s1 + $0x30] sm:$0xff]
  %v34 = vld [vmem:[%s1 + $0x38] sm:$0xff]
  %v35 = vld [vmem:[%s1 + $0x40] sm:$0xff]
  %v36 = vld [vmem:[%s1 + $0x48] sm:$0xff]
  %v37 = vld [vmem:[%s1 + $0x50] sm:$0xff]
  %v38 = vld [vmem:[%s1 + $0x58] sm:$0xff]
  %v39 = vld [vmem:[%s1 + $0x60] sm:$0xff]
  %v40 = vld [vmem:[%s1 + $0x68] sm:$0xff]
  %v41 = vld [vmem:[%s1 + $0x70] sm:$0xff]
  %v42 = vld [vmem:[%s1 + $0x78] sm:$0xff]
  %43 = vmatprep.subr.mxu0 0.0
  %44 = vmatpush1.msra.mxu0 %v27
  %45 = vmatprep.subr.mxu0 0.0
  %46 = vmatpush1.msra.mxu0 %v28
  %47 = vmatprep.subr.mxu0 0.0
  %48 = vmatpush1.msra.mxu0 %v29
  %49 = vmatprep.subr.mxu0 0.0
  %50 = vmatpush1.msra.mxu0 %v30
  %51 = vmatprep.subr.mxu0 0.0
  %52 = vmatpush1.msra.mxu0 %v31
  %53 = vmatprep.subr.mxu0 0.0
  %54 = vmatpush1.msra.mxu0 %v32
  %55 = vmatprep.subr.mxu0 0.0
  %56 = vmatpush1.msra.mxu0 %v33
  %57 = vmatprep.subr.mxu0 0.0
  %58 = vmatpush1.msra.mxu0 %v34
  %59 = vmatprep.subr.mxu0 0.0
  %60 = vmatpush1.msra.mxu0 %v35
  %61 = vmatprep.subr.mxu0 0.0
  %62 = vmatpush1.msra.mxu0 %v36
  %63 = vmatprep.subr.mxu0 0.0
  %64 = vmatpush1.msra.mxu0 %v37
  %65 = vmatprep.subr.mxu0 0.0
  %66 = vmatpush1.msra.mxu0 %v38
  %67 = vmatprep.subr.mxu0 0.0
  %68 = vmatpush1.msra.mxu0 %v39
  %69 = vmatprep.subr.mxu0 0.0
  %70 = vmatpush1.msra.mxu0 %v40
  %71 = vmatprep.subr.mxu0 0.0
  %72 = vmatpush1.msra.mxu0 %v41
  %73 = vmatprep.subr.mxu0 0.0
  %74 = vmatpush1.msra.mxu0 %v42
  %75 = vmatprep.subr.mxu0 0.0
  %76 = vmatpush1.msra.mxu0 0.0
  %77 = vmatprep.subr.mxu0 0.0
  %78 = vmatpush1.msra.mxu0 0.0
  %79 = vmatprep.subr.mxu0 0.0
  %80 = vmatpush1.msra.mxu0 0.0
  %81 = vmatprep.subr.mxu0 0.0
  %82 = vmatpush1.msra.mxu0 0.0
  %83 = vmatprep.subr.mxu0 0.0
  %84 = vmatpush1.msra.mxu0 0.0
  %85 = vmatprep.subr.mxu0 0.0
  %86 = vmatpush1.msra.mxu0 0.0
  %87 = vmatprep.subr.mxu0 0.0
  %88 = vmatpush1.msra.mxu0 0.0
  %89 = vmatprep.subr.mxu0 0.0
  %90 = vmatpush1.msra.mxu0 0.0
  %91 = vmatprep.subr.mxu0 0.0
  %92 = vmatpush1.msra.mxu0 0.0
  %93 = vmatprep.subr.mxu0 0.0
  %94 = vmatpush1.msra.mxu0 0.0
  %95 = vmatprep.subr.mxu0 0.0
  %96 = vmatpush1.msra.mxu0 0.0
  %97 = vmatprep.subr.mxu0 0.0
  %98 = vmatpush1.msra.mxu0 0.0
  %99 = vmatprep.subr.mxu0 0.0
  %100 = vmatpush1.msra.mxu0 0.0
  %101 = vmatprep.subr.mxu0 0.0
  %102 = vmatpush1.msra.mxu0 0.0
  %103 = vmatprep.subr.mxu0 0.0
  %104 = vmatpush1.msra.mxu0 0.0
  %105 = vmatprep.subr.mxu0 0.0
  %106 = vmatpush1.msra.mxu0 0.0
  %107 = vmatprep.mubr.f32.mxu0 0.0
  %108 = vmatmul.mubr.f32.gmra.mrb[0].mxu0 %v11
  %v109 = vpop.f32.mrb[0].mxu0
  %v110 = vadd.f32 0.0, %v109
  %v111 = vpop.f32.mrb[0].mxu0
  %112 = vmatprep.mubr.f32.mxu0 0.0
  %113 = vmatmul.mubr.f32.gmra.mrb[0].mxu0 %v12
  %v114 = vpop.f32.mrb[0].mxu0
  %v115 = vadd.f32 0.0, %v114
  %v116 = vpop.f32.mrb[0].mxu0
  %117 = vmatprep.mubr.f32.mxu0 0.0
  %118 = vmatmul.mubr.f32.gmra.mrb[0].mxu0 %v13
  %v119 = vpop.f32.mrb[0].mxu0
  %v120 = vadd.f32 0.0, %v119
  %v121 = vpop.f32.mrb[0].mxu0
  %122 = vmatprep.mubr.f32.mxu0 0.0
  %123 = vmatmul.mubr.f32.gmra.mrb[0].mxu0 %v14
  %v124 = vpop.f32.mrb[0].mxu0
  %v125 = vadd.f32 0.0, %v124
  %v126 = vpop.f32.mrb[0].mxu0
  %127 = vmatprep.mubr.f32.mxu0 0.0
  %128 = vmatmul.mubr.f32.gmra.mrb[0].mxu0 %v15
  %v129 = vpop.f32.mrb[0].mxu0
  %v130 = vadd.f32 0.0, %v129
  %v131 = vpop.f32.mrb[0].mxu0
  %132 = vmatprep.mubr.f32.mxu0 0.0
  %133 = vmatmul.mubr.f32.gmra.mrb[0].mxu0 %v16
  %v134 = vpop.f32.mrb[0].mxu0
  %v135 = vadd.f32 0.0, %v134
  %v136 = vpop.f32.mrb[0].mxu0
  %137 = vmatprep.mubr.f32.mxu0 0.0
  %138 = vmatmul.mubr.f32.gmra.mrb[0].mxu0 %v17
  %v139 = vpop.f32.mrb[0].mxu0
  %v140 = vadd.f32 0.0, %v139
  %v141 = vpop.f32.mrb[0].mxu0
  %142 = vmatprep.mubr.f32.mxu0 0.0
  %143 = vmatmul.mubr.f32.gmra.mrb[0].mxu0 %v18
  %v144 = vpop.f32.mrb[0].mxu0
  %v145 = vadd.f32 0.0, %v144
  %v146 = vpop.f32.mrb[0].mxu0
  %147 = vmatprep.mubr.f32.mxu0 0.0
  %148 = vmatmul.mubr.f32.gmra.mrb[0].mxu0 %v19
  %v149 = vpop.f32.mrb[0].mxu0
  %v150 = vadd.f32 0.0, %v149
  %v151 = vpop.f32.mrb[0].mxu0
  %152 = vmatprep.mubr.f32.mxu0 0.0
  %153 = vmatmul.mubr.f32.gmra.mrb[0].mxu0 %v20
  %v154 = vpop.f32.mrb[0].mxu0
  %v155 = vadd.f32 0.0, %v154
  %v156 = vpop.f32.mrb[0].mxu0
  %157 = vmatprep.mubr.f32.mxu0 0.0
  %158 = vmatmul.mubr.f32.gmra.mrb[0].mxu0 %v21
  %v159 = vpop.f32.mrb[0].mxu0
  %v160 = vadd.f32 0.0, %v159
  %v161 = vpop.f32.mrb[0].mxu0
  %162 = vmatprep.mubr.f32.mxu0 0.0
  %163 = vmatmul.mubr.f32.gmra.mrb[0].mxu0 %v22
  %v164 = vpop.f32.mrb[0].mxu0
  %v165 = vadd.f32 0.0, %v164
  %v166 = vpop.f32.mrb[0].mxu0
  %167 = vmatprep.mubr.f32.mxu0 0.0
  %168 = vmatmul.mubr.f32.gmra.mrb[0].mxu0 %v23
  %v169 = vpop.f32.mrb[0].mxu0
  %v170 = vadd.f32 0.0, %v169
  %v171 = vpop.f32.mrb[0].mxu0
  %172 = vmatprep.mubr.f32.mxu0 0.0
  %173 = vmatmul.mubr.f32.gmra.mrb[0].mxu0 %v24
  %v174 = vpop.f32.mrb[0].mxu0
  %v175 = vadd.f32 0.0, %v174
  %v176 = vpop.f32.mrb[0].mxu0
  %177 = vmatprep.mubr.f32.mxu0 0.0
  %178 = vmatmul.mubr.f32.gmra.mrb[0].mxu0 %v25
  %v179 = vpop.f32.mrb[0].mxu0
  %v180 = vadd.f32 0.0, %v179
  %v181 = vpop.f32.mrb[0].mxu0
  %182 = vmatprep.mubr.f32.mxu0 0.0
  %183 = vmatmul.mubr.f32.gmra.mrb[0].mxu0 %v26
  %v184 = vpop.f32.mrb[0].mxu0
  %v185 = vadd.f32 0.0, %v184
  %v186 = vpop.f32.mrb[0].mxu0
  %187 = vdwg.mxu0
  %188 = vst [vmem:[%s2] sm:$0xff] %v110
  %189 = vst [vmem:[%s2 + $0x8] sm:$0xff] %v115
  %190 = vst [vmem:[%s2 + $0x10] sm:$0xff] %v120
  %191 = vst [vmem:[%s2 + $0x18] sm:$0xff] %v125
  %192 = vst [vmem:[%s2 + $0x20] sm:$0xff] %v130
  %193 = vst [vmem:[%s2 + $0x28] sm:$0xff] %v135
  %194 = vst [vmem:[%s2 + $0x30] sm:$0xff] %v140
  %195 = vst [vmem:[%s2 + $0x38] sm:$0xff] %v145
  %196 = vst [vmem:[%s2 + $0x40] sm:$0xff] %v150
  %197 = vst [vmem:[%s2 + $0x48] sm:$0xff] %v155
  %198 = vst [vmem:[%s2 + $0x50] sm:$0xff] %v160
  %199 = vst [vmem:[%s2 + $0x58] sm:$0xff] %v165
  %200 = vst [vmem:[%s2 + $0x60] sm:$0xff] %v170
  %201 = vst [vmem:[%s2 + $0x68] sm:$0xff] %v175
  %202 = vst [vmem:[%s2 + $0x70] sm:$0xff] %v180
  %203 = vst [vmem:[%s2 + $0x78] sm:$0xff] %v185
  // Predicated region
  $region10: #{dominant_forward.9} parent=0 // pred_check
    _
  $region11: #{dominant_forward.9} parent=0 // pred_check_branch
    %205 = sbr.rel (0) target = $region13
  $region12: #{dominant_forward.9} parent=0 // pred_region
    _
  $region13: #{dominant_forward.9} parent=0 // pred_fallthru
    _
  // Predicated region
  $region14: #{dominant_forward.9} parent=0 // pred_check
    _
  $region15: #{dominant_forward.9} parent=0 // pred_check_branch
    %207 = sbr.rel (0) target = $region17
  $region16: #{dominant_forward.9} parent=0 // pred_region
    _
  $region17: #{dominant_forward.9} parent=0 // pred_fallthru
    _

// kernel: dominant_forward.10
$region0: #{dominant_forward.10}
  #allocation0 [shape = 'u32[]', space=smem, size = 0x4, offset = 0x4, fixed_abs, tag = 'smem constant byte address 0x4 - core index']
  #allocation1 [shape = 'u32[144,128]{1,0:T(1,128)}', space=vmem, size = 0x12000, scoped, tag = 'internal scratch']
  #allocation2 [shape = 'f32[128,128]{1,0:T(8,128)}', space=vmem, size = 0x10000, scoped, tag = 'scratch operand']
  %s0 = inlined_call_operand.vmem [shape: f32[128,128], index: 0, kind: input, shape index: {}]
  %s1 = inlined_call_operand.vmem [shape: f32[128,128], index: 1, kind: input, shape index: {}]
  %s2 = inlined_call_operand.vmem [shape: f32[1,128], index: 2, kind: input, shape index: {}]
  %s3 = inlined_call_operand.vmem [shape: f32[128,128], index: 3, kind: output, shape index: {}]
  %s4 = sld [smem:[#allocation0]]
  $region30: #{dominant_forward.10} parent=0
    _
  %s6 = ssub.s32 1, %s4
  %s7 = scalar_select 0, %s6, %s4
  // Predicated region
  $region2: #{dominant_forward.10} parent=0 // pred_check
    _
  $region3: #{dominant_forward.10} parent=0 // pred_check_branch
    %9 = sbr.rel (0) target = $region5
  $region4: #{dominant_forward.10} parent=0 // pred_region
    _
  $region5: #{dominant_forward.10} parent=0 // pred_fallthru
    _
  // Predicated region
  $region6: #{dominant_forward.10} parent=0 // pred_check
    _
  $region7: #{dominant_forward.10} parent=0 // pred_check_branch
    %11 = sbr.rel (0) target = $region9
  $region8: #{dominant_forward.10} parent=0 // pred_region
    _
  $region9: #{dominant_forward.10} parent=0 // pred_fallthru
    _
  // Predicated region
  $region10: #{dominant_forward.10} parent=0 // pred_check
    _
  $region11: #{dominant_forward.10} parent=0 // pred_check_branch
    %13 = sbr.rel (0) target = $region13
  $region12: #{dominant_forward.10} parent=0 // pred_region
    _
  $region13: #{dominant_forward.10} parent=0 // pred_fallthru
    _
  %p14 = scmp.eq.s32.totalorder 0, 0
  // Predicated region
  $region14: #{dominant_forward.10} parent=0 // pred_check
    %p15 = pneg %p14
  $region15: #{dominant_forward.10} parent=0 // pred_check_branch
    %17 = sbr.rel (%p15) target = $region17
  $region16: #{dominant_forward.10} parent=0 // pred_region
    %18 = vst [vmem:[#allocation2] sm:$0xff] 0.0
    %19 = vst [vmem:[#allocation2 + $0x8] sm:$0xff] 0.0
    %20 = vst [vmem:[#allocation2 + $0x10] sm:$0xff] 0.0
    %21 = vst [vmem:[#allocation2 + $0x18] sm:$0xff] 0.0
    %22 = vst [vmem:[#allocation2 + $0x20] sm:$0xff] 0.0
    %23 = vst [vmem:[#allocation2 + $0x28] sm:$0xff] 0.0
    %24 = vst [vmem:[#allocation2 + $0x30] sm:$0xff] 0.0
    %25 = vst [vmem:[#allocation2 + $0x38] sm:$0xff] 0.0
    %26 = vst [vmem:[#allocation2 + $0x40] sm:$0xff] 0.0
    %27 = vst [vmem:[#allocation2 + $0x48] sm:$0xff] 0.0
    %28 = vst [vmem:[#allocation2 + $0x50] sm:$0xff] 0.0
    %29 = vst [vmem:[#allocation2 + $0x58] sm:$0xff] 0.0
    %30 = vst [vmem:[#allocation2 + $0x60] sm:$0xff] 0.0
    %31 = vst [vmem:[#allocation2 + $0x68] sm:$0xff] 0.0
    %32 = vst [vmem:[#allocation2 + $0x70] sm:$0xff] 0.0
    %33 = vst [vmem:[#allocation2 + $0x78] sm:$0xff] 0.0
  $region17: #{dominant_forward.10} parent=0 // pred_fallthru
    _
  %v34 = vld [vmem:[%s0] sm:$0xff]
  %v35 = vld [vmem:[%s0 + $0x8] sm:$0xff]
  %v36 = vld [vmem:[%s0 + $0x10] sm:$0xff]
  %v37 = vld [vmem:[%s0 + $0x18] sm:$0xff]
  %v38 = vld [vmem:[%s0 + $0x20] sm:$0xff]
  %v39 = vld [vmem:[%s0 + $0x28] sm:$0xff]
  %v40 = vld [vmem:[%s0 + $0x30] sm:$0xff]
  %v41 = vld [vmem:[%s0 + $0x38] sm:$0xff]
  %v42 = vld [vmem:[%s0 + $0x40] sm:$0xff]
  %v43 = vld [vmem:[%s0 + $0x48] sm:$0xff]
  %v44 = vld [vmem:[%s0 + $0x50] sm:$0xff]
  %v45 = vld [vmem:[%s0 + $0x58] sm:$0xff]
  %v46 = vld [vmem:[%s0 + $0x60] sm:$0xff]
  %v47 = vld [vmem:[%s0 + $0x68] sm:$0xff]
  %v48 = vld [vmem:[%s0 + $0x70] sm:$0xff]
  %v49 = vld [vmem:[%s0 + $0x78] sm:$0xff]
  %s50 = smul.u32 0, 128
  %s51 = scalar_lea.vmem %s1, %s50
  %v52 = vld [vmem:[%s51] sm:$0xff]
  %v53 = vld [vmem:[%s51 + $0x8] sm:$0xff]
  %v54 = vld [vmem:[%s51 + $0x10] sm:$0xff]
  %v55 = vld [vmem:[%s51 + $0x18] sm:$0xff]
  %v56 = vld [vmem:[%s51 + $0x20] sm:$0xff]
  %v57 = vld [vmem:[%s51 + $0x28] sm:$0xff]
  %v58 = vld [vmem:[%s51 + $0x30] sm:$0xff]
  %v59 = vld [vmem:[%s51 + $0x38] sm:$0xff]
  %v60 = vld [vmem:[%s51 + $0x40] sm:$0xff]
  %v61 = vld [vmem:[%s51 + $0x48] sm:$0xff]
  %v62 = vld [vmem:[%s51 + $0x50] sm:$0xff]
  %v63 = vld [vmem:[%s51 + $0x58] sm:$0xff]
  %v64 = vld [vmem:[%s51 + $0x60] sm:$0xff]
  %v65 = vld [vmem:[%s51 + $0x68] sm:$0xff]
  %v66 = vld [vmem:[%s51 + $0x70] sm:$0xff]
  %v67 = vld [vmem:[%s51 + $0x78] sm:$0xff]
  %v68 = vld [vmem:[#allocation2] sm:$0xff]
  %v69 = vld [vmem:[#allocation2 + $0x8] sm:$0xff]
  %v70 = vld [vmem:[#allocation2 + $0x10] sm:$0xff]
  %v71 = vld [vmem:[#allocation2 + $0x18] sm:$0xff]
  %v72 = vld [vmem:[#allocation2 + $0x20] sm:$0xff]
  %v73 = vld [vmem:[#allocation2 + $0x28] sm:$0xff]
  %v74 = vld [vmem:[#allocation2 + $0x30] sm:$0xff]
  %v75 = vld [vmem:[#allocation2 + $0x38] sm:$0xff]
  %v76 = vld [vmem:[#allocation2 + $0x40] sm:$0xff]
  %v77 = vld [vmem:[#allocation2 + $0x48] sm:$0xff]
  %v78 = vld [vmem:[#allocation2 + $0x50] sm:$0xff]
  %v79 = vld [vmem:[#allocation2 + $0x58] sm:$0xff]
  %v80 = vld [vmem:[#allocation2 + $0x60] sm:$0xff]
  %v81 = vld [vmem:[#allocation2 + $0x68] sm:$0xff]
  %v82 = vld [vmem:[#allocation2 + $0x70] sm:$0xff]
  %v83 = vld [vmem:[#allocation2 + $0x78] sm:$0xff]
  %84 = vmatprep.subr.mxu0 0.0
  %85 = vmatpush1.msra.mxu0 %v52
  %86 = vmatprep.subr.mxu0 0.0
  %87 = vmatpush1.msra.mxu0 %v53
  %88 = vmatprep.subr.mxu0 0.0
  %89 = vmatpush1.msra.mxu0 %v54
  %90 = vmatprep.subr.mxu0 0.0
  %91 = vmatpush1.msra.mxu0 %v55
  %92 = vmatprep.subr.mxu0 0.0
  %93 = vmatpush1.msra.mxu0 %v56
  %94 = vmatprep.subr.mxu0 0.0
  %95 = vmatpush1.msra.mxu0 %v57
  %96 = vmatprep.subr.mxu0 0.0
  %97 = vmatpush1.msra.mxu0 %v58
  %98 = vmatprep.subr.mxu0 0.0
  %99 = vmatpush1.msra.mxu0 %v59
  %100 = vmatprep.subr.mxu0 0.0
  %101 = vmatpush1.msra.mxu0 %v60
  %102 = vmatprep.subr.mxu0 0.0
  %103 = vmatpush1.msra.mxu0 %v61
  %104 = vmatprep.subr.mxu0 0.0
  %105 = vmatpush1.msra.mxu0 %v62
  %106 = vmatprep.subr.mxu0 0.0
  %107 = vmatpush1.msra.mxu0 %v63
  %108 = vmatprep.subr.mxu0 0.0
  %109 = vmatpush1.msra.mxu0 %v64
  %110 = vmatprep.subr.mxu0 0.0
  %111 = vmatpush1.msra.mxu0 %v65
  %112 = vmatprep.subr.mxu0 0.0
  %113 = vmatpush1.msra.mxu0 %v66
  %114 = vmatprep.subr.mxu0 0.0
  %115 = vmatpush1.msra.mxu0 %v67
  %116 = vmatprep.subr.mxu0 0.0
  %117 = vmatpush1.msra.mxu0 0.0
  %118 = vmatprep.subr.mxu0 0.0
  %119 = vmatpush1.msra.mxu0 0.0
  %120 = vmatprep.subr.mxu0 0.0
  %121 = vmatpush1.msra.mxu0 0.0
  %122 = vmatprep.subr.mxu0 0.0
  %123 = vmatpush1.msra.mxu0 0.0
  %124 = vmatprep.subr.mxu0 0.0
  %125 = vmatpush1.msra.mxu0 0.0
  %126 = vmatprep.subr.mxu0 0.0
  %127 = vmatpush1.msra.mxu0 0.0
  %128 = vmatprep.subr.mxu0 0.0
  %129 = vmatpush1.msra.mxu0 0.0
  %130 = vmatprep.subr.mxu0 0.0
  %131 = vmatpush1.msra.mxu0 0.0
  %132 = vmatprep.subr.mxu0 0.0
  %133 = vmatpush1.msra.mxu0 0.0
  %134 = vmatprep.subr.mxu0 0.0
  %135 = vmatpush1.msra.mxu0 0.0
  %136 = vmatprep.subr.mxu0 0.0
  %137 = vmatpush1.msra.mxu0 0.0
  %138 = vmatprep.subr.mxu0 0.0
  %139 = vmatpush1.msra.mxu0 0.0
  %140 = vmatprep.subr.mxu0 0.0
  %141 = vmatpush1.msra.mxu0 0.0
  %142 = vmatprep.subr.mxu0 0.0
  %143 = vmatpush1.msra.mxu0 0.0
  %144 = vmatprep.subr.mxu0 0.0
  %145 = vmatpush1.msra.mxu0 0.0
  %146 = vmatprep.subr.mxu0 0.0
  %147 = vmatpush1.msra.mxu0 0.0
  %148 = vmatprep.mubr.f32.mxu0 0.0
  %149 = vmatmul.mubr.f32.gmra.mrb[0].mxu0 %v34
  %v150 = vpop.f32.mrb[0].mxu0
  %v151 = vadd.f32 0.0, %v150
  %v152 = vpop.f32.mrb[0].mxu0
  %153 = vmatprep.mubr.f32.mxu0 0.0
  %154 = vmatmul.mubr.f32.gmra.mrb[0].mxu0 %v35
  %v155 = vpop.f32.mrb[0].mxu0
  %v156 = vadd.f32 0.0, %v155
  %v157 = vpop.f32.mrb[0].mxu0
  %158 = vmatprep.mubr.f32.mxu0 0.0
  %159 = vmatmul.mubr.f32.gmra.mrb[0].mxu0 %v36
  %v160 = vpop.f32.mrb[0].mxu0
  %v161 = vadd.f32 0.0, %v160
  %v162 = vpop.f32.mrb[0].mxu0
  %163 = vmatprep.mubr.f32.mxu0 0.0
  %164 = vmatmul.mubr.f32.gmra.mrb[0].mxu0 %v37
  %v165 = vpop.f32.mrb[0].mxu0
  %v166 = vadd.f32 0.0, %v165
  %v167 = vpop.f32.mrb[0].mxu0
  %168 = vmatprep.mubr.f32.mxu0 0.0
  %169 = vmatmul.mubr.f32.gmra.mrb[0].mxu0 %v38
  %v170 = vpop.f32.mrb[0].mxu0
  %v171 = vadd.f32 0.0, %v170
  %v172 = vpop.f32.mrb[0].mxu0
  %173 = vmatprep.mubr.f32.mxu0 0.0
  %174 = vmatmul.mubr.f32.gmra.mrb[0].mxu0 %v39
  %v175 = vpop.f32.mrb[0].mxu0
  %v176 = vadd.f32 0.0, %v175
  %v177 = vpop.f32.mrb[0].mxu0
  %178 = vmatprep.mubr.f32.mxu0 0.0
  %179 = vmatmul.mubr.f32.gmra.mrb[0].mxu0 %v40
  %v180 = vpop.f32.mrb[0].mxu0
  %v181 = vadd.f32 0.0, %v180
  %v182 = vpop.f32.mrb[0].mxu0
  %183 = vmatprep.mubr.f32.mxu0 0.0
  %184 = vmatmul.mubr.f32.gmra.mrb[0].mxu0 %v41
  %v185 = vpop.f32.mrb[0].mxu0
  %v186 = vadd.f32 0.0, %v185
  %v187 = vpop.f32.mrb[0].mxu0
  %188 = vmatprep.mubr.f32.mxu0 0.0
  %189 = vmatmul.mubr.f32.gmra.mrb[0].mxu0 %v42
  %v190 = vpop.f32.mrb[0].mxu0
  %v191 = vadd.f32 0.0, %v190
  %v192 = vpop.f32.mrb[0].mxu0
  %193 = vmatprep.mubr.f32.mxu0 0.0
  %194 = vmatmul.mubr.f32.gmra.mrb[0].mxu0 %v43
  %v195 = vpop.f32.mrb[0].mxu0
  %v196 = vadd.f32 0.0, %v195
  %v197 = vpop.f32.mrb[0].mxu0
  %198 = vmatprep.mubr.f32.mxu0 0.0
  %199 = vmatmul.mubr.f32.gmra.mrb[0].mxu0 %v44
  %v200 = vpop.f32.mrb[0].mxu0
  %v201 = vadd.f32 0.0, %v200
  %v202 = vpop.f32.mrb[0].mxu0
  %203 = vmatprep.mubr.f32.mxu0 0.0
  %204 = vmatmul.mubr.f32.gmra.mrb[0].mxu0 %v45
  %v205 = vpop.f32.mrb[0].mxu0
  %v206 = vadd.f32 0.0, %v205
  %v207 = vpop.f32.mrb[0].mxu0
  %208 = vmatprep.mubr.f32.mxu0 0.0
  %209 = vmatmul.mubr.f32.gmra.mrb[0].mxu0 %v46
  %v210 = vpop.f32.mrb[0].mxu0
  %v211 = vadd.f32 0.0, %v210
  %v212 = vpop.f32.mrb[0].mxu0
  %213 = vmatprep.mubr.f32.mxu0 0.0
  %214 = vmatmul.mubr.f32.gmra.mrb[0].mxu0 %v47
  %v215 = vpop.f32.mrb[0].mxu0
  %v216 = vadd.f32 0.0, %v215
  %v217 = vpop.f32.mrb[0].mxu0
  %218 = vmatprep.mubr.f32.mxu0 0.0
  %219 = vmatmul.mubr.f32.gmra.mrb[0].mxu0 %v48
  %v220 = vpop.f32.mrb[0].mxu0
  %v221 = vadd.f32 0.0, %v220
  %v222 = vpop.f32.mrb[0].mxu0
  %223 = vmatprep.mubr.f32.mxu0 0.0
  %224 = vmatmul.mubr.f32.gmra.mrb[0].mxu0 %v49
  %v225 = vpop.f32.mrb[0].mxu0
  %v226 = vadd.f32 0.0, %v225
  %v227 = vpop.f32.mrb[0].mxu0
  %228 = vdwg.mxu0
  %v229 = vadd.f32 %v68, %v151
  %v230 = vadd.f32 %v69, %v156
  %v231 = vadd.f32 %v70, %v161
  %v232 = vadd.f32 %v71, %v166
  %v233 = vadd.f32 %v72, %v171
  %v234 = vadd.f32 %v73, %v176
  %v235 = vadd.f32 %v74, %v181
  %v236 = vadd.f32 %v75, %v186
  %v237 = vadd.f32 %v76, %v191
  %v238 = vadd.f32 %v77, %v196
  %v239 = vadd.f32 %v78, %v201
  %v240 = vadd.f32 %v79, %v206
  %v241 = vadd.f32 %v80, %v211
  %v242 = vadd.f32 %v81, %v216
  %v243 = vadd.f32 %v82, %v221
  %v244 = vadd.f32 %v83, %v226
  %245 = vst [vmem:[#allocation2] sm:$0xff] %v229
  %246 = vst [vmem:[#allocation2 + $0x8] sm:$0xff] %v230
  %247 = vst [vmem:[#allocation2 + $0x10] sm:$0xff] %v231
  %248 = vst [vmem:[#allocation2 + $0x18] sm:$0xff] %v232
  %249 = vst [vmem:[#allocation2 + $0x20] sm:$0xff] %v233
  %250 = vst [vmem:[#allocation2 + $0x28] sm:$0xff] %v234
  %251 = vst [vmem:[#allocation2 + $0x30] sm:$0xff] %v235
  %252 = vst [vmem:[#allocation2 + $0x38] sm:$0xff] %v236
  %253 = vst [vmem:[#allocation2 + $0x40] sm:$0xff] %v237
  %254 = vst [vmem:[#allocation2 + $0x48] sm:$0xff] %v238
  %255 = vst [vmem:[#allocation2 + $0x50] sm:$0xff] %v239
  %256 = vst [vmem:[#allocation2 + $0x58] sm:$0xff] %v240
  %257 = vst [vmem:[#allocation2 + $0x60] sm:$0xff] %v241
  %258 = vst [vmem:[#allocation2 + $0x68] sm:$0xff] %v242
  %259 = vst [vmem:[#allocation2 + $0x70] sm:$0xff] %v243
  %260 = vst [vmem:[#allocation2 + $0x78] sm:$0xff] %v244
  // Predicated region
  $region18: #{dominant_forward.10} parent=0 // pred_check
    %p261 = pneg %p14
  $region19: #{dominant_forward.10} parent=0 // pred_check_branch
    %263 = sbr.rel (%p261) target = $region21
  $region20: #{dominant_forward.10} parent=0 // pred_region
    %v264 = vld [vmem:[#allocation2] sm:$0xff]
    %v265 = vld [vmem:[#allocation2 + $0x8] sm:$0xff]
    %v266 = vld [vmem:[#allocation2 + $0x10] sm:$0xff]
    %v267 = vld [vmem:[#allocation2 + $0x18] sm:$0xff]
    %v268 = vld [vmem:[#allocation2 + $0x20] sm:$0xff]
    %v269 = vld [vmem:[#allocation2 + $0x28] sm:$0xff]
    %v270 = vld [vmem:[#allocation2 + $0x30] sm:$0xff]
    %v271 = vld [vmem:[#allocation2 + $0x38] sm:$0xff]
    %v272 = vld [vmem:[#allocation2 + $0x40] sm:$0xff]
    %v273 = vld [vmem:[#allocation2 + $0x48] sm:$0xff]
    %v274 = vld [vmem:[#allocation2 + $0x50] sm:$0xff]
    %v275 = vld [vmem:[#allocation2 + $0x58] sm:$0xff]
    %v276 = vld [vmem:[#allocation2 + $0x60] sm:$0xff]
    %v277 = vld [vmem:[#allocation2 + $0x68] sm:$0xff]
    %v278 = vld [vmem:[#allocation2 + $0x70] sm:$0xff]
    %v279 = vld [vmem:[#allocation2 + $0x78] sm:$0xff]
    %v280 = vld [vmem:[%s2] sm:$0x1]
    %v282 = vlaneseq
    %v283 = vshrl.u32 %v282, 7
    %v284 = vsub.s32 0, %v283
    %v285 = vrot.slane %v280, %v284
    %v287 = vadd.f32 %v264, %v285
    %v288 = vadd.f32 %v265, %v285
    %v289 = vadd.f32 %v266, %v285
    %v290 = vadd.f32 %v267, %v285
    %v291 = vadd.f32 %v268, %v285
    %v292 = vadd.f32 %v269, %v285
    %v293 = vadd.f32 %v270, %v285
    %v294 = vadd.f32 %v271, %v285
    %v295 = vadd.f32 %v272, %v285
    %v296 = vadd.f32 %v273, %v285
    %v297 = vadd.f32 %v274, %v285
    %v298 = vadd.f32 %v275, %v285
    %v299 = vadd.f32 %v276, %v285
    %v300 = vadd.f32 %v277, %v285
    %v301 = vadd.f32 %v278, %v285
    %v302 = vadd.f32 %v279, %v285
    %v303 = vmax.f32 %v287, 0.0
    %v304 = vmax.f32 %v288, 0.0
    %v305 = vmax.f32 %v289, 0.0
    %v306 = vmax.f32 %v290, 0.0
    %v307 = vmax.f32 %v291, 0.0
    %v308 = vmax.f32 %v292, 0.0
    %v309 = vmax.f32 %v293, 0.0
    %v310 = vmax.f32 %v294, 0.0
    %v311 = vmax.f32 %v295, 0.0
    %v312 = vmax.f32 %v296, 0.0
    %v313 = vmax.f32 %v297, 0.0
    %v314 = vmax.f32 %v298, 0.0
    %v315 = vmax.f32 %v299, 0.0
    %v316 = vmax.f32 %v300, 0.0
    %v317 = vmax.f32 %v301, 0.0
    %v318 = vmax.f32 %v302, 0.0
    %319 = vst [vmem:[%s3] sm:$0xff] %v303
    %320 = vst [vmem:[%s3 + $0x8] sm:$0xff] %v304
    %321 = vst [vmem:[%s3 + $0x10] sm:$0xff] %v305
    %322 = vst [vmem:[%s3 + $0x18] sm:$0xff] %v306
    %323 = vst [vmem:[%s3 + $0x20] sm:$0xff] %v307
    %324 = vst [vmem:[%s3 + $0x28] sm:$0xff] %v308
    %325 = vst [vmem:[%s3 + $0x30] sm:$0xff] %v309
    %326 = vst [vmem:[%s3 + $0x38] sm:$0xff] %v310
    %327 = vst [vmem:[%s3 + $0x40] sm:$0xff] %v311
    %328 = vst [vmem:[%s3 + $0x48] sm:$0xff] %v312
    %329 = vst [vmem:[%s3 + $0x50] sm:$0xff] %v313
    %330 = vst [vmem:[%s3 + $0x58] sm:$0xff] %v314
    %331 = vst [vmem:[%s3 + $0x60] sm:$0xff] %v315
    %332 = vst [vmem:[%s3 + $0x68] sm:$0xff] %v316
    %333 = vst [vmem:[%s3 + $0x70] sm:$0xff] %v317
    %334 = vst [vmem:[%s3 + $0x78] sm:$0xff] %v318
  $region21: #{dominant_forward.10} parent=0 // pred_fallthru
    _
  // Predicated region
  $region22: #{dominant_forward.10} parent=0 // pred_check
    _
  $region23: #{dominant_forward.10} parent=0 // pred_check_branch
    %336 = sbr.rel (0) target = $region25
  $region24: #{dominant_forward.10} parent=0 // pred_region
    _
  $region25: #{dominant_forward.10} parent=0 // pred_fallthru
    _
  // Predicated region
  $region26: #{dominant_forward.10} parent=0 // pred_check
    _
  $region27: #{dominant_forward.10} parent=0 // pred_check_branch
    %338 = sbr.rel (0) target = $region29
  $region28: #{dominant_forward.10} parent=0 // pred_region
    _
  $region29: #{dominant_forward.10} parent=0 // pred_fallthru
    _

// kernel: dominant_forward.13
$region0: #{dominant_forward.13}
  #allocation0 [shape = 'u32[]', space=smem, size = 0x4, offset = 0x4, fixed_abs, tag = 'smem constant byte address 0x4 - core index']
  #allocation1 [shape = 'u32[144,128]{1,0:T(1,128)}', space=vmem, size = 0x12000, scoped, tag = 'internal scratch']
  %s0 = inlined_call_operand.vmem [shape: f32[128,128], index: 0, kind: input, shape index: {}]
  %s1 = inlined_call_operand.vmem [shape: f32[128,256], index: 1, kind: input, shape index: {}]
  %s2 = inlined_call_operand.vmem [shape: f32[128,256], index: 2, kind: output, shape index: {}]
  %s3 = sld [smem:[#allocation0]]
  $region18: #{dominant_forward.13} parent=0
    _
  %s5 = ssub.s32 1, %s3
  %s6 = scalar_select 0, %s5, %s3
  // Predicated region
  $region2: #{dominant_forward.13} parent=0 // pred_check
    _
  $region3: #{dominant_forward.13} parent=0 // pred_check_branch
    %8 = sbr.rel (0) target = $region5
  $region4: #{dominant_forward.13} parent=0 // pred_region
    _
  $region5: #{dominant_forward.13} parent=0 // pred_fallthru
    _
  // Predicated region
  $region6: #{dominant_forward.13} parent=0 // pred_check
    _
  $region7: #{dominant_forward.13} parent=0 // pred_check_branch
    %10 = sbr.rel (0) target = $region9
  $region8: #{dominant_forward.13} parent=0 // pred_region
    _
  $region9: #{dominant_forward.13} parent=0 // pred_fallthru
    _
  %v11 = vld [vmem:[%s0] sm:$0xff]
  %v12 = vld [vmem:[%s0 + $0x8] sm:$0xff]
  %v13 = vld [vmem:[%s0 + $0x10] sm:$0xff]
  %v14 = vld [vmem:[%s0 + $0x18] sm:$0xff]
  %v15 = vld [vmem:[%s0 + $0x20] sm:$0xff]
  %v16 = vld [vmem:[%s0 + $0x28] sm:$0xff]
  %v17 = vld [vmem:[%s0 + $0x30] sm:$0xff]
  %v18 = vld [vmem:[%s0 + $0x38] sm:$0xff]
  %v19 = vld [vmem:[%s0 + $0x40] sm:$0xff]
  %v20 = vld [vmem:[%s0 + $0x48] sm:$0xff]
  %v21 = vld [vmem:[%s0 + $0x50] sm:$0xff]
  %v22 = vld [vmem:[%s0 + $0x58] sm:$0xff]
  %v23 = vld [vmem:[%s0 + $0x60] sm:$0xff]
  %v24 = vld [vmem:[%s0 + $0x68] sm:$0xff]
  %v25 = vld [vmem:[%s0 + $0x70] sm:$0xff]
  %v26 = vld [vmem:[%s0 + $0x78] sm:$0xff]
  %v27 = vld [vmem:[%s1] sm:$0xff]
  %v28 = vld [vmem:[%s1 + $0x8] sm:$0xff]
  %v29 = vld [vmem:[%s1 + $0x10] sm:$0xff]
  %v30 = vld [vmem:[%s1 + $0x18] sm:$0xff]
  %v31 = vld [vmem:[%s1 + $0x20] sm:$0xff]
  %v32 = vld [vmem:[%s1 + $0x28] sm:$0xff]
  %v33 = vld [vmem:[%s1 + $0x30] sm:$0xff]
  %v34 = vld [vmem:[%s1 + $0x38] sm:$0xff]
  %v35 = vld [vmem:[%s1 + $0x40] sm:$0xff]
  %v36 = vld [vmem:[%s1 + $0x48] sm:$0xff]
  %v37 = vld [vmem:[%s1 + $0x50] sm:$0xff]
  %v38 = vld [vmem:[%s1 + $0x58] sm:$0xff]
  %v39 = vld [vmem:[%s1 + $0x60] sm:$0xff]
  %v40 = vld [vmem:[%s1 + $0x68] sm:$0xff]
  %v41 = vld [vmem:[%s1 + $0x70] sm:$0xff]
  %v42 = vld [vmem:[%s1 + $0x78] sm:$0xff]
  %v43 = vld [vmem:[%s1 + $0x80] sm:$0xff]
  %v44 = vld [vmem:[%s1 + $0x88] sm:$0xff]
  %v45 = vld [vmem:[%s1 + $0x90] sm:$0xff]
  %v46 = vld [vmem:[%s1 + $0x98] sm:$0xff]
  %v47 = vld [vmem:[%s1 + $0xa0] sm:$0xff]
  %v48 = vld [vmem:[%s1 + $0xa8] sm:$0xff]
  %v49 = vld [vmem:[%s1 + $0xb0] sm:$0xff]
  %v50 = vld [vmem:[%s1 + $0xb8] sm:$0xff]
  %v51 = vld [vmem:[%s1 + $0xc0] sm:$0xff]
  %v52 = vld [vmem:[%s1 + $0xc8] sm:$0xff]
  %v53 = vld [vmem:[%s1 + $0xd0] sm:$0xff]
  %v54 = vld [vmem:[%s1 + $0xd8] sm:$0xff]
  %v55 = vld [vmem:[%s1 + $0xe0] sm:$0xff]
  %v56 = vld [vmem:[%s1 + $0xe8] sm:$0xff]
  %v57 = vld [vmem:[%s1 + $0xf0] sm:$0xff]
  %v58 = vld [vmem:[%s1 + $0xf8] sm:$0xff]
  %59 = vmatprep.subr.mxu0 %v28
  %60 = vmatpush1.msra.mxu0 %v27
  %61 = vmatprep.subr.mxu0 %v30
  %62 = vmatpush1.msra.mxu0 %v29
  %63 = vmatprep.subr.mxu0 %v32
  %64 = vmatpush1.msra.mxu0 %v31
  %65 = vmatprep.subr.mxu0 %v34
  %66 = vmatpush1.msra.mxu0 %v33
  %67 = vmatprep.subr.mxu0 %v36
  %68 = vmatpush1.msra.mxu0 %v35
  %69 = vmatprep.subr.mxu0 %v38
  %70 = vmatpush1.msra.mxu0 %v37
  %71 = vmatprep.subr.mxu0 %v40
  %72 = vmatpush1.msra.mxu0 %v39
  %73 = vmatprep.subr.mxu0 %v42
  %74 = vmatpush1.msra.mxu0 %v41
  %75 = vmatprep.subr.mxu0 %v44
  %76 = vmatpush1.msra.mxu0 %v43
  %77 = vmatprep.subr.mxu0 %v46
  %78 = vmatpush1.msra.mxu0 %v45
  %79 = vmatprep.subr.mxu0 %v48
  %80 = vmatpush1.msra.mxu0 %v47
  %81 = vmatprep.subr.mxu0 %v50
  %82 = vmatpush1.msra.mxu0 %v49
  %83 = vmatprep.subr.mxu0 %v52
  %84 = vmatpush1.msra.mxu0 %v51
  %85 = vmatprep.subr.mxu0 %v54
  %86 = vmatpush1.msra.mxu0 %v53
  %87 = vmatprep.subr.mxu0 %v56
  %88 = vmatpush1.msra.mxu0 %v55
  %89 = vmatprep.subr.mxu0 %v58
  %90 = vmatpush1.msra.mxu0 %v57
  %91 = vmatprep.subr.mxu0 0.0
  %92 = vmatpush1.msra.mxu0 0.0
  %93 = vmatprep.subr.mxu0 0.0
  %94 = vmatpush1.msra.mxu0 0.0
  %95 = vmatprep.subr.mxu0 0.0
  %96 = vmatpush1.msra.mxu0 0.0
  %97 = vmatprep.subr.mxu0 0.0
  %98 = vmatpush1.msra.mxu0 0.0
  %99 = vmatprep.subr.mxu0 0.0
  %100 = vmatpush1.msra.mxu0 0.0
  %101 = vmatprep.subr.mxu0 0.0
  %102 = vmatpush1.msra.mxu0 0.0
  %103 = vmatprep.subr.mxu0 0.0
  %104 = vmatpush1.msra.mxu0 0.0
  %105 = vmatprep.subr.mxu0 0.0
  %106 = vmatpush1.msra.mxu0 0.0
  %107 = vmatprep.subr.mxu0 0.0
  %108 = vmatpush1.msra.mxu0 0.0
  %109 = vmatprep.subr.mxu0 0.0
  %110 = vmatpush1.msra.mxu0 0.0
  %111 = vmatprep.subr.mxu0 0.0
  %112 = vmatpush1.msra.mxu0 0.0
  %113 = vmatprep.subr.mxu0 0.0
  %114 = vmatpush1.msra.mxu0 0.0
  %115 = vmatprep.subr.mxu0 0.0
  %116 = vmatpush1.msra.mxu0 0.0
  %117 = vmatprep.subr.mxu0 0.0
  %118 = vmatpush1.msra.mxu0 0.0
  %119 = vmatprep.subr.mxu0 0.0
  %120 = vmatpush1.msra.mxu0 0.0
  %121 = vmatprep.subr.mxu0 0.0
  %122 = vmatpush1.msra.mxu0 0.0
  %123 = vmatprep.mubr.f32.mxu0 0.0
  %124 = vmatmul.mubr.f32.gmra.mrb[0].mxu0 %v11
  %v125 = vpop.f32.mrb[0].mxu0
  %v126 = vadd.f32 0.0, %v125
  %v127 = vpop.f32.mrb[0].mxu0
  %v128 = vadd.f32 0.0, %v127
  %129 = vmatprep.mubr.f32.mxu0 0.0
  %130 = vmatmul.mubr.f32.gmra.mrb[0].mxu0 %v12
  %v131 = vpop.f32.mrb[0].mxu0
  %v132 = vadd.f32 0.0, %v131
  %v133 = vpop.f32.mrb[0].mxu0
  %v134 = vadd.f32 0.0, %v133
  %135 = vmatprep.mubr.f32.mxu0 0.0
  %136 = vmatmul.mubr.f32.gmra.mrb[0].mxu0 %v13
  %v137 = vpop.f32.mrb[0].mxu0
  %v138 = vadd.f32 0.0, %v137
  %v139 = vpop.f32.mrb[0].mxu0
  %v140 = vadd.f32 0.0, %v139
  %141 = vmatprep.mubr.f32.mxu0 0.0
  %142 = vmatmul.mubr.f32.gmra.mrb[0].mxu0 %v14
  %v143 = vpop.f32.mrb[0].mxu0
  %v144 = vadd.f32 0.0, %v143
  %v145 = vpop.f32.mrb[0].mxu0
  %v146 = vadd.f32 0.0, %v145
  %147 = vmatprep.mubr.f32.mxu0 0.0
  %148 = vmatmul.mubr.f32.gmra.mrb[0].mxu0 %v15
  %v149 = vpop.f32.mrb[0].mxu0
  %v150 = vadd.f32 0.0, %v149
  %v151 = vpop.f32.mrb[0].mxu0
  %v152 = vadd.f32 0.0, %v151
  %153 = vmatprep.mubr.f32.mxu0 0.0
  %154 = vmatmul.mubr.f32.gmra.mrb[0].mxu0 %v16
  %v155 = vpop.f32.mrb[0].mxu0
  %v156 = vadd.f32 0.0, %v155
  %v157 = vpop.f32.mrb[0].mxu0
  %v158 = vadd.f32 0.0, %v157
  %159 = vmatprep.mubr.f32.mxu0 0.0
  %160 = vmatmul.mubr.f32.gmra.mrb[0].mxu0 %v17
  %v161 = vpop.f32.mrb[0].mxu0
  %v162 = vadd.f32 0.0, %v161
  %v163 = vpop.f32.mrb[0].mxu0
  %v164 = vadd.f32 0.0, %v163
  %165 = vmatprep.mubr.f32.mxu0 0.0
  %166 = vmatmul.mubr.f32.gmra.mrb[0].mxu0 %v18
  %v167 = vpop.f32.mrb[0].mxu0
  %v168 = vadd.f32 0.0, %v167
  %v169 = vpop.f32.mrb[0].mxu0
  %v170 = vadd.f32 0.0, %v169
  %171 = vmatprep.mubr.f32.mxu0 0.0
  %172 = vmatmul.mubr.f32.gmra.mrb[0].mxu0 %v19
  %v173 = vpop.f32.mrb[0].mxu0
  %v174 = vadd.f32 0.0, %v173
  %v175 = vpop.f32.mrb[0].mxu0
  %v176 = vadd.f32 0.0, %v175
  %177 = vmatprep.mubr.f32.mxu0 0.0
  %178 = vmatmul.mubr.f32.gmra.mrb[0].mxu0 %v20
  %v179 = vpop.f32.mrb[0].mxu0
  %v180 = vadd.f32 0.0, %v179
  %v181 = vpop.f32.mrb[0].mxu0
  %v182 = vadd.f32 0.0, %v181
  %183 = vmatprep.mubr.f32.mxu0 0.0
  %184 = vmatmul.mubr.f32.gmra.mrb[0].mxu0 %v21
  %v185 = vpop.f32.mrb[0].mxu0
  %v186 = vadd.f32 0.0, %v185
  %v187 = vpop.f32.mrb[0].mxu0
  %v188 = vadd.f32 0.0, %v187
  %189 = vmatprep.mubr.f32.mxu0 0.0
  %190 = vmatmul.mubr.f32.gmra.mrb[0].mxu0 %v22
  %v191 = vpop.f32.mrb[0].mxu0
  %v192 = vadd.f32 0.0, %v191
  %v193 = vpop.f32.mrb[0].mxu0
  %v194 = vadd.f32 0.0, %v193
  %195 = vmatprep.mubr.f32.mxu0 0.0
  %196 = vmatmul.mubr.f32.gmra.mrb[0].mxu0 %v23
  %v197 = vpop.f32.mrb[0].mxu0
  %v198 = vadd.f32 0.0, %v197
  %v199 = vpop.f32.mrb[0].mxu0
  %v200 = vadd.f32 0.0, %v199
  %201 = vmatprep.mubr.f32.mxu0 0.0
  %202 = vmatmul.mubr.f32.gmra.mrb[0].mxu0 %v24
  %v203 = vpop.f32.mrb[0].mxu0
  %v204 = vadd.f32 0.0, %v203
  %v205 = vpop.f32.mrb[0].mxu0
  %v206 = vadd.f32 0.0, %v205
  %207 = vmatprep.mubr.f32.mxu0 0.0
  %208 = vmatmul.mubr.f32.gmra.mrb[0].mxu0 %v25
  %v209 = vpop.f32.mrb[0].mxu0
  %v210 = vadd.f32 0.0, %v209
  %v211 = vpop.f32.mrb[0].mxu0
  %v212 = vadd.f32 0.0, %v211
  %213 = vmatprep.mubr.f32.mxu0 0.0
  %214 = vmatmul.mubr.f32.gmra.mrb[0].mxu0 %v26
  %v215 = vpop.f32.mrb[0].mxu0
  %v216 = vadd.f32 0.0, %v215
  %v217 = vpop.f32.mrb[0].mxu0
  %v218 = vadd.f32 0.0, %v217
  %219 = vdwg.mxu0
  %220 = vst [vmem:[%s2] sm:$0xff] %v126
  %221 = vst [vmem:[%s2 + $0x8] sm:$0xff] %v128
  %222 = vst [vmem:[%s2 + $0x10] sm:$0xff] %v132
  %223 = vst [vmem:[%s2 + $0x18] sm:$0xff] %v134
  %224 = vst [vmem:[%s2 + $0x20] sm:$0xff] %v138
  %225 = vst [vmem:[%s2 + $0x28] sm:$0xff] %v140
  %226 = vst [vmem:[%s2 + $0x30] sm:$0xff] %v144
  %227 = vst [vmem:[%s2 + $0x38] sm:$0xff] %v146
  %228 = vst [vmem:[%s2 + $0x40] sm:$0xff] %v150
  %229 = vst [vmem:[%s2 + $0x48] sm:$0xff] %v152
  %230 = vst [vmem:[%s2 + $0x50] sm:$0xff] %v156
  %231 = vst [vmem:[%s2 + $0x58] sm:$0xff] %v158
  %232 = vst [vmem:[%s2 + $0x60] sm:$0xff] %v162
  %233 = vst [vmem:[%s2 + $0x68] sm:$0xff] %v164
  %234 = vst [vmem:[%s2 + $0x70] sm:$0xff] %v168
  %235 = vst [vmem:[%s2 + $0x78] sm:$0xff] %v170
  %236 = vst [vmem:[%s2 + $0x80] sm:$0xff] %v174
  %237 = vst [vmem:[%s2 + $0x88] sm:$0xff] %v176
  %238 = vst [vmem:[%s2 + $0x90] sm:$0xff] %v180
  %239 = vst [vmem:[%s2 + $0x98] sm:$0xff] %v182
  %240 = vst [vmem:[%s2 + $0xa0] sm:$0xff] %v186
  %241 = vst [vmem:[%s2 + $0xa8] sm:$0xff] %v188
  %242 = vst [vmem:[%s2 + $0xb0] sm:$0xff] %v192
  %243 = vst [vmem:[%s2 + $0xb8] sm:$0xff] %v194
  %244 = vst [vmem:[%s2 + $0xc0] sm:$0xff] %v198
  %245 = vst [vmem:[%s2 + $0xc8] sm:$0xff] %v200
  %246 = vst [vmem:[%s2 + $0xd0] sm:$0xff] %v204
  %247 = vst [vmem:[%s2 + $0xd8] sm:$0xff] %v206
  %248 = vst [vmem:[%s2 + $0xe0] sm:$0xff] %v210
  %249 = vst [vmem:[%s2 + $0xe8] sm:$0xff] %v212
  %250 = vst [vmem:[%s2 + $0xf0] sm:$0xff] %v216
  %251 = vst [vmem:[%s2 + $0xf8] sm:$0xff] %v218
  // Predicated region
  $region10: #{dominant_forward.13} parent=0 // pred_check
    _
  $region11: #{dominant_forward.13} parent=0 // pred_check_branch
    %253 = sbr.rel (0) target = $region13
  $region12: #{dominant_forward.13} parent=0 // pred_region
    _
  $region13: #{dominant_forward.13} parent=0 // pred_fallthru
    _
  // Predicated region
  $region14: #{dominant_forward.13} parent=0 // pred_check
    _
  $region15: #{dominant_forward.13} parent=0 // pred_check_branch
    %255 = sbr.rel (0) target = $region17
  $region16: #{dominant_forward.13} parent=0 // pred_region
    _
  $region17: #{dominant_forward.13} parent=0 // pred_fallthru
    _

// kernel: dominant_forward.14
$region0: #{dominant_forward.14}
  #allocation0 [shape = 'u32[]', space=smem, size = 0x4, offset = 0x4, fixed_abs, tag = 'smem constant byte address 0x4 - core index']
  #allocation1 [shape = 'u32[144,128]{1,0:T(1,128)}', space=vmem, size = 0x12000, scoped, tag = 'internal scratch']
  #allocation2 [shape = 'f32[128,256]{1,0:T(8,128)}', space=vmem, size = 0x20000, scoped, tag = 'scratch operand']
  %s0 = inlined_call_operand.vmem [shape: f32[128,128], index: 0, kind: input, shape index: {}]
  %s1 = inlined_call_operand.vmem [shape: f32[128,256], index: 1, kind: input, shape index: {}]
  %s2 = inlined_call_operand.vmem [shape: f32[1,256], index: 2, kind: input, shape index: {}]
  %s3 = inlined_call_operand.vmem [shape: f32[128,256], index: 3, kind: output, shape index: {}]
  %s4 = sld [smem:[#allocation0]]
  $region30: #{dominant_forward.14} parent=0
    _
  %s6 = ssub.s32 1, %s4
  %s7 = scalar_select 0, %s6, %s4
  // Predicated region
  $region2: #{dominant_forward.14} parent=0 // pred_check
    _
  $region3: #{dominant_forward.14} parent=0 // pred_check_branch
    %9 = sbr.rel (0) target = $region5
  $region4: #{dominant_forward.14} parent=0 // pred_region
    _
  $region5: #{dominant_forward.14} parent=0 // pred_fallthru
    _
  // Predicated region
  $region6: #{dominant_forward.14} parent=0 // pred_check
    _
  $region7: #{dominant_forward.14} parent=0 // pred_check_branch
    %11 = sbr.rel (0) target = $region9
  $region8: #{dominant_forward.14} parent=0 // pred_region
    _
  $region9: #{dominant_forward.14} parent=0 // pred_fallthru
    _
  // Predicated region
  $region10: #{dominant_forward.14} parent=0 // pred_check
    _
  $region11: #{dominant_forward.14} parent=0 // pred_check_branch
    %13 = sbr.rel (0) target = $region13
  $region12: #{dominant_forward.14} parent=0 // pred_region
    _
  $region13: #{dominant_forward.14} parent=0 // pred_fallthru
    _
  %p14 = scmp.eq.s32.totalorder 0, 0
  // Predicated region
  $region14: #{dominant_forward.14} parent=0 // pred_check
    %p15 = pneg %p14
  $region15: #{dominant_forward.14} parent=0 // pred_check_branch
    %17 = sbr.rel (%p15) target = $region17
  $region16: #{dominant_forward.14} parent=0 // pred_region
    %18 = vst [vmem:[#allocation2] sm:$0xff] 0.0
    %19 = vst [vmem:[#allocation2 + $0x8] sm:$0xff] 0.0
    %20 = vst [vmem:[#allocation2 + $0x10] sm:$0xff] 0.0
    %21 = vst [vmem:[#allocation2 + $0x18] sm:$0xff] 0.0
    %22 = vst [vmem:[#allocation2 + $0x20] sm:$0xff] 0.0
    %23 = vst [vmem:[#allocation2 + $0x28] sm:$0xff] 0.0
    %24 = vst [vmem:[#allocation2 + $0x30] sm:$0xff] 0.0
    %25 = vst [vmem:[#allocation2 + $0x38] sm:$0xff] 0.0
    %26 = vst [vmem:[#allocation2 + $0x40] sm:$0xff] 0.0
    %27 = vst [vmem:[#allocation2 + $0x48] sm:$0xff] 0.0
    %28 = vst [vmem:[#allocation2 + $0x50] sm:$0xff] 0.0
    %29 = vst [vmem:[#allocation2 + $0x58] sm:$0xff] 0.0
    %30 = vst [vmem:[#allocation2 + $0x60] sm:$0xff] 0.0
    %31 = vst [vmem:[#allocation2 + $0x68] sm:$0xff] 0.0
    %32 = vst [vmem:[#allocation2 + $0x70] sm:$0xff] 0.0
    %33 = vst [vmem:[#allocation2 + $0x78] sm:$0xff] 0.0
    %34 = vst [vmem:[#allocation2 + $0x80] sm:$0xff] 0.0
    %35 = vst [vmem:[#allocation2 + $0x88] sm:$0xff] 0.0
    %36 = vst [vmem:[#allocation2 + $0x90] sm:$0xff] 0.0
    %37 = vst [vmem:[#allocation2 + $0x98] sm:$0xff] 0.0
    %38 = vst [vmem:[#allocation2 + $0xa0] sm:$0xff] 0.0
    %39 = vst [vmem:[#allocation2 + $0xa8] sm:$0xff] 0.0
    %40 = vst [vmem:[#allocation2 + $0xb0] sm:$0xff] 0.0
    %41 = vst [vmem:[#allocation2 + $0xb8] sm:$0xff] 0.0
    %42 = vst [vmem:[#allocation2 + $0xc0] sm:$0xff] 0.0
    %43 = vst [vmem:[#allocation2 + $0xc8] sm:$0xff] 0.0
    %44 = vst [vmem:[#allocation2 + $0xd0] sm:$0xff] 0.0
    %45 = vst [vmem:[#allocation2 + $0xd8] sm:$0xff] 0.0
    %46 = vst [vmem:[#allocation2 + $0xe0] sm:$0xff] 0.0
    %47 = vst [vmem:[#allocation2 + $0xe8] sm:$0xff] 0.0
    %48 = vst [vmem:[#allocation2 + $0xf0] sm:$0xff] 0.0
    %49 = vst [vmem:[#allocation2 + $0xf8] sm:$0xff] 0.0
  $region17: #{dominant_forward.14} parent=0 // pred_fallthru
    _
  %v50 = vld [vmem:[%s0] sm:$0xff]
  %v51 = vld [vmem:[%s0 + $0x8] sm:$0xff]
  %v52 = vld [vmem:[%s0 + $0x10] sm:$0xff]
  %v53 = vld [vmem:[%s0 + $0x18] sm:$0xff]
  %v54 = vld [vmem:[%s0 + $0x20] sm:$0xff]
  %v55 = vld [vmem:[%s0 + $0x28] sm:$0xff]
  %v56 = vld [vmem:[%s0 + $0x30] sm:$0xff]
  %v57 = vld [vmem:[%s0 + $0x38] sm:$0xff]
  %v58 = vld [vmem:[%s0 + $0x40] sm:$0xff]
  %v59 = vld [vmem:[%s0 + $0x48] sm:$0xff]
  %v60 = vld [vmem:[%s0 + $0x50] sm:$0xff]
  %v61 = vld [vmem:[%s0 + $0x58] sm:$0xff]
  %v62 = vld [vmem:[%s0 + $0x60] sm:$0xff]
  %v63 = vld [vmem:[%s0 + $0x68] sm:$0xff]
  %v64 = vld [vmem:[%s0 + $0x70] sm:$0xff]
  %v65 = vld [vmem:[%s0 + $0x78] sm:$0xff]
  %s66 = smul.u32 0, 128
  %s67 = sshra.s32 %s66, 3
  %s68 = sand.u32 %s66, 7
  %s69 = smul.u32 %s67, 2
  %s70 = smul.addr %s69, 8
  %s71 = scalar_lea.vmem %s1, %s70
  %v72 = vld [vmem:[%s71] sm:$0xff]
  %v73 = vld [vmem:[%s71 + $0x8] sm:$0xff]
  %v74 = vld [vmem:[%s71 + $0x10] sm:$0xff]
  %v75 = vld [vmem:[%s71 + $0x18] sm:$0xff]
  %v76 = vld [vmem:[%s71 + $0x20] sm:$0xff]
  %v77 = vld [vmem:[%s71 + $0x28] sm:$0xff]
  %v78 = vld [vmem:[%s71 + $0x30] sm:$0xff]
  %v79 = vld [vmem:[%s71 + $0x38] sm:$0xff]
  %v80 = vld [vmem:[%s71 + $0x40] sm:$0xff]
  %v81 = vld [vmem:[%s71 + $0x48] sm:$0xff]
  %v82 = vld [vmem:[%s71 + $0x50] sm:$0xff]
  %v83 = vld [vmem:[%s71 + $0x58] sm:$0xff]
  %v84 = vld [vmem:[%s71 + $0x60] sm:$0xff]
  %v85 = vld [vmem:[%s71 + $0x68] sm:$0xff]
  %v86 = vld [vmem:[%s71 + $0x70] sm:$0xff]
  %v87 = vld [vmem:[%s71 + $0x78] sm:$0xff]
  %v88 = vld [vmem:[%s71 + $0x80] sm:$0xff]
  %v89 = vld [vmem:[%s71 + $0x88] sm:$0xff]
  %v90 = vld [vmem:[%s71 + $0x90] sm:$0xff]
  %v91 = vld [vmem:[%s71 + $0x98] sm:$0xff]
  %v92 = vld [vmem:[%s71 + $0xa0] sm:$0xff]
  %v93 = vld [vmem:[%s71 + $0xa8] sm:$0xff]
  %v94 = vld [vmem:[%s71 + $0xb0] sm:$0xff]
  %v95 = vld [vmem:[%s71 + $0xb8] sm:$0xff]
  %v96 = vld [vmem:[%s71 + $0xc0] sm:$0xff]
  %v97 = vld [vmem:[%s71 + $0xc8] sm:$0xff]
  %v98 = vld [vmem:[%s71 + $0xd0] sm:$0xff]
  %v99 = vld [vmem:[%s71 + $0xd8] sm:$0xff]
  %v100 = vld [vmem:[%s71 + $0xe0] sm:$0xff]
  %v101 = vld [vmem:[%s71 + $0xe8] sm:$0xff]
  %v102 = vld [vmem:[%s71 + $0xf0] sm:$0xff]
  %v103 = vld [vmem:[%s71 + $0xf8] sm:$0xff]
  %v104 = vld [vmem:[#allocation2] sm:$0xff]
  %v105 = vld [vmem:[#allocation2 + $0x8] sm:$0xff]
  %v106 = vld [vmem:[#allocation2 + $0x10] sm:$0xff]
  %v107 = vld [vmem:[#allocation2 + $0x18] sm:$0xff]
  %v108 = vld [vmem:[#allocation2 + $0x20] sm:$0xff]
  %v109 = vld [vmem:[#allocation2 + $0x28] sm:$0xff]
  %v110 = vld [vmem:[#allocation2 + $0x30] sm:$0xff]
  %v111 = vld [vmem:[#allocation2 + $0x38] sm:$0xff]
  %v112 = vld [vmem:[#allocation2 + $0x40] sm:$0xff]
  %v113 = vld [vmem:[#allocation2 + $0x48] sm:$0xff]
  %v114 = vld [vmem:[#allocation2 + $0x50] sm:$0xff]
  %v115 = vld [vmem:[#allocation2 + $0x58] sm:$0xff]
  %v116 = vld [vmem:[#allocation2 + $0x60] sm:$0xff]
  %v117 = vld [vmem:[#allocation2 + $0x68] sm:$0xff]
  %v118 = vld [vmem:[#allocation2 + $0x70] sm:$0xff]
  %v119 = vld [vmem:[#allocation2 + $0x78] sm:$0xff]
  %v120 = vld [vmem:[#allocation2 + $0x80] sm:$0xff]
  %v121 = vld [vmem:[#allocation2 + $0x88] sm:$0xff]
  %v122 = vld [vmem:[#allocation2 + $0x90] sm:$0xff]
  %v123 = vld [vmem:[#allocation2 + $0x98] sm:$0xff]
  %v124 = vld [vmem:[#allocation2 + $0xa0] sm:$0xff]
  %v125 = vld [vmem:[#allocation2 + $0xa8] sm:$0xff]
  %v126 = vld [vmem:[#allocation2 + $0xb0] sm:$0xff]
  %v127 = vld [vmem:[#allocation2 + $0xb8] sm:$0xff]
  %v128 = vld [vmem:[#allocation2 + $0xc0] sm:$0xff]
  %v129 = vld [vmem:[#allocation2 + $0xc8] sm:$0xff]
  %v130 = vld [vmem:[#allocation2 + $0xd0] sm:$0xff]
  %v131 = vld [vmem:[#allocation2 + $0xd8] sm:$0xff]
  %v132 = vld [vmem:[#allocation2 + $0xe0] sm:$0xff]
  %v133 = vld [vmem:[#allocation2 + $0xe8] sm:$0xff]
  %v134 = vld [vmem:[#allocation2 + $0xf0] sm:$0xff]
  %v135 = vld [vmem:[#allocation2 + $0xf8] sm:$0xff]
  %136 = vmatprep.subr.mxu0 %v73
  %137 = vmatpush1.msra.mxu0 %v72
  %138 = vmatprep.subr.mxu0 %v75
  %139 = vmatpush1.msra.mxu0 %v74
  %140 = vmatprep.subr.mxu0 %v77
  %141 = vmatpush1.msra.mxu0 %v76
  %142 = vmatprep.subr.mxu0 %v79
  %143 = vmatpush1.msra.mxu0 %v78
  %144 = vmatprep.subr.mxu0 %v81
  %145 = vmatpush1.msra.mxu0 %v80
  %146 = vmatprep.subr.mxu0 %v83
  %147 = vmatpush1.msra.mxu0 %v82
  %148 = vmatprep.subr.mxu0 %v85
  %149 = vmatpush1.msra.mxu0 %v84
  %150 = vmatprep.subr.mxu0 %v87
  %151 = vmatpush1.msra.mxu0 %v86
  %152 = vmatprep.subr.mxu0 %v89
  %153 = vmatpush1.msra.mxu0 %v88
  %154 = vmatprep.subr.mxu0 %v91
  %155 = vmatpush1.msra.mxu0 %v90
  %156 = vmatprep.subr.mxu0 %v93
  %157 = vmatpush1.msra.mxu0 %v92
  %158 = vmatprep.subr.mxu0 %v95
  %159 = vmatpush1.msra.mxu0 %v94
  %160 = vmatprep.subr.mxu0 %v97
  %161 = vmatpush1.msra.mxu0 %v96
  %162 = vmatprep.subr.mxu0 %v99
  %163 = vmatpush1.msra.mxu0 %v98
  %164 = vmatprep.subr.mxu0 %v101
  %165 = vmatpush1.msra.mxu0 %v100
  %166 = vmatprep.subr.mxu0 %v103
  %167 = vmatpush1.msra.mxu0 %v102
  %168 = vmatprep.subr.mxu0 0.0
  %169 = vmatpush1.msra.mxu0 0.0
  %170 = vmatprep.subr.mxu0 0.0
  %171 = vmatpush1.msra.mxu0 0.0
  %172 = vmatprep.subr.mxu0 0.0
  %173 = vmatpush1.msra.mxu0 0.0
  %174 = vmatprep.subr.mxu0 0.0
  %175 = vmatpush1.msra.mxu0 0.0
  %176 = vmatprep.subr.mxu0 0.0
  %177 = vmatpush1.msra.mxu0 0.0
  %178 = vmatprep.subr.mxu0 0.0
  %179 = vmatpush1.msra.mxu0 0.0
  %180 = vmatprep.subr.mxu0 0.0
  %181 = vmatpush1.msra.mxu0 0.0
  %182 = vmatprep.subr.mxu0 0.0
  %183 = vmatpush1.msra.mxu0 0.0
  %184 = vmatprep.subr.mxu0 0.0
  %185 = vmatpush1.msra.mxu0 0.0
  %186 = vmatprep.subr.mxu0 0.0
  %187 = vmatpush1.msra.mxu0 0.0
  %188 = vmatprep.subr.mxu0 0.0
  %189 = vmatpush1.msra.mxu0 0.0
  %190 = vmatprep.subr.mxu0 0.0
  %191 = vmatpush1.msra.mxu0 0.0
  %192 = vmatprep.subr.mxu0 0.0
  %193 = vmatpush1.msra.mxu0 0.0
  %194 = vmatprep.subr.mxu0 0.0
  %195 = vmatpush1.msra.mxu0 0.0
  %196 = vmatprep.subr.mxu0 0.0
  %197 = vmatpush1.msra.mxu0 0.0
  %198 = vmatprep.subr.mxu0 0.0
  %199 = vmatpush1.msra.mxu0 0.0
  %200 = vmatprep.mubr.f32.mxu0 0.0
  %201 = vmatmul.mubr.f32.gmra.mrb[0].mxu0 %v50
  %v202 = vpop.f32.mrb[0].mxu0
  %v203 = vadd.f32 0.0, %v202
  %v204 = vpop.f32.mrb[0].mxu0
  %v205 = vadd.f32 0.0, %v204
  %206 = vmatprep.mubr.f32.mxu0 0.0
  %207 = vmatmul.mubr.f32.gmra.mrb[0].mxu0 %v51
  %v208 = vpop.f32.mrb[0].mxu0
  %v209 = vadd.f32 0.0, %v208
  %v210 = vpop.f32.mrb[0].mxu0
  %v211 = vadd.f32 0.0, %v210
  %212 = vmatprep.mubr.f32.mxu0 0.0
  %213 = vmatmul.mubr.f32.gmra.mrb[0].mxu0 %v52
  %v214 = vpop.f32.mrb[0].mxu0
  %v215 = vadd.f32 0.0, %v214
  %v216 = vpop.f32.mrb[0].mxu0
  %v217 = vadd.f32 0.0, %v216
  %218 = vmatprep.mubr.f32.mxu0 0.0
  %219 = vmatmul.mubr.f32.gmra.mrb[0].mxu0 %v53
  %v220 = vpop.f32.mrb[0].mxu0
  %v221 = vadd.f32 0.0, %v220
  %v222 = vpop.f32.mrb[0].mxu0
  %v223 = vadd.f32 0.0, %v222
  %224 = vmatprep.mubr.f32.mxu0 0.0
  %225 = vmatmul.mubr.f32.gmra.mrb[0].mxu0 %v54
  %v226 = vpop.f32.mrb[0].mxu0
  %v227 = vadd.f32 0.0, %v226
  %v228 = vpop.f32.mrb[0].mxu0
  %v229 = vadd.f32 0.0, %v228
  %230 = vmatprep.mubr.f32.mxu0 0.0
  %231 = vmatmul.mubr.f32.gmra.mrb[0].mxu0 %v55
  %v232 = vpop.f32.mrb[0].mxu0
  %v233 = vadd.f32 0.0, %v232
  %v234 = vpop.f32.mrb[0].mxu0
  %v235 = vadd.f32 0.0, %v234
  %236 = vmatprep.mubr.f32.mxu0 0.0
  %237 = vmatmul.mubr.f32.gmra.mrb[0].mxu0 %v56
  %v238 = vpop.f32.mrb[0].mxu0
  %v239 = vadd.f32 0.0, %v238
  %v240 = vpop.f32.mrb[0].mxu0
  %v241 = vadd.f32 0.0, %v240
  %242 = vmatprep.mubr.f32.mxu0 0.0
  %243 = vmatmul.mubr.f32.gmra.mrb[0].mxu0 %v57
  %v244 = vpop.f32.mrb[0].mxu0
  %v245 = vadd.f32 0.0, %v244
  %v246 = vpop.f32.mrb[0].mxu0
  %v247 = vadd.f32 0.0, %v246
  %248 = vmatprep.mubr.f32.mxu0 0.0
  %249 = vmatmul.mubr.f32.gmra.mrb[0].mxu0 %v58
  %v250 = vpop.f32.mrb[0].mxu0
  %v251 = vadd.f32 0.0, %v250
  %v252 = vpop.f32.mrb[0].mxu0
  %v253 = vadd.f32 0.0, %v252
  %254 = vmatprep.mubr.f32.mxu0 0.0
  %255 = vmatmul.mubr.f32.gmra.mrb[0].mxu0 %v59
  %v256 = vpop.f32.mrb[0].mxu0
  %v257 = vadd.f32 0.0, %v256
  %v258 = vpop.f32.mrb[0].mxu0
  %v259 = vadd.f32 0.0, %v258
  %260 = vmatprep.mubr.f32.mxu0 0.0
  %261 = vmatmul.mubr.f32.gmra.mrb[0].mxu0 %v60
  %v262 = vpop.f32.mrb[0].mxu0
  %v263 = vadd.f32 0.0, %v262
  %v264 = vpop.f32.mrb[0].mxu0
  %v265 = vadd.f32 0.0, %v264
  %266 = vmatprep.mubr.f32.mxu0 0.0
  %267 = vmatmul.mubr.f32.gmra.mrb[0].mxu0 %v61
  %v268 = vpop.f32.mrb[0].mxu0
  %v269 = vadd.f32 0.0, %v268
  %v270 = vpop.f32.mrb[0].mxu0
  %v271 = vadd.f32 0.0, %v270
  %272 = vmatprep.mubr.f32.mxu0 0.0
  %273 = vmatmul.mubr.f32.gmra.mrb[0].mxu0 %v62
  %v274 = vpop.f32.mrb[0].mxu0
  %v275 = vadd.f32 0.0, %v274
  %v276 = vpop.f32.mrb[0].mxu0
  %v277 = vadd.f32 0.0, %v276
  %278 = vmatprep.mubr.f32.mxu0 0.0
  %279 = vmatmul.mubr.f32.gmra.mrb[0].mxu0 %v63
  %v280 = vpop.f32.mrb[0].mxu0
  %v281 = vadd.f32 0.0, %v280
  %v282 = vpop.f32.mrb[0].mxu0
  %v283 = vadd.f32 0.0, %v282
  %284 = vmatprep.mubr.f32.mxu0 0.0
  %285 = vmatmul.mubr.f32.gmra.mrb[0].mxu0 %v64
  %v286 = vpop.f32.mrb[0].mxu0
  %v287 = vadd.f32 0.0, %v286
  %v288 = vpop.f32.mrb[0].mxu0
  %v289 = vadd.f32 0.0, %v288
  %290 = vmatprep.mubr.f32.mxu0 0.0
  %291 = vmatmul.mubr.f32.gmra.mrb[0].mxu0 %v65
  %v292 = vpop.f32.mrb[0].mxu0
  %v293 = vadd.f32 0.0, %v292
  %v294 = vpop.f32.mrb[0].mxu0
  %v295 = vadd.f32 0.0, %v294
  %296 = vdwg.mxu0
  %v297 = vadd.f32 %v104, %v203
  %v298 = vadd.f32 %v105, %v205
  %v299 = vadd.f32 %v106, %v209
  %v300 = vadd.f32 %v107, %v211
  %v301 = vadd.f32 %v108, %v215
  %v302 = vadd.f32 %v109, %v217
  %v303 = vadd.f32 %v110, %v221
  %v304 = vadd.f32 %v111, %v223
  %v305 = vadd.f32 %v112, %v227
  %v306 = vadd.f32 %v113, %v229
  %v307 = vadd.f32 %v114, %v233
  %v308 = vadd.f32 %v115, %v235
  %v309 = vadd.f32 %v116, %v239
  %v310 = vadd.f32 %v117, %v241
  %v311 = vadd.f32 %v118, %v245
  %v312 = vadd.f32 %v119, %v247
  %v313 = vadd.f32 %v120, %v251
  %v314 = vadd.f32 %v121, %v253
  %v315 = vadd.f32 %v122, %v257
  %v316 = vadd.f32 %v123, %v259
  %v317 = vadd.f32 %v124, %v263
  %v318 = vadd.f32 %v125, %v265
  %v319 = vadd.f32 %v126, %v269
  %v320 = vadd.f32 %v127, %v271
  %v321 = vadd.f32 %v128, %v275
  %v322 = vadd.f32 %v129, %v277
  %v323 = vadd.f32 %v130, %v281
  %v324 = vadd.f32 %v131, %v283
  %v325 = vadd.f32 %v132, %v287
  %v326 = vadd.f32 %v133, %v289
  %v327 = vadd.f32 %v134, %v293
  %v328 = vadd.f32 %v135, %v295
  %329 = vst [vmem:[#allocation2] sm:$0xff] %v297
  %330 = vst [vmem:[#allocation2 + $0x8] sm:$0xff] %v298
  %331 = vst [vmem:[#allocation2 + $0x10] sm:$0xff] %v299
  %332 = vst [vmem:[#allocation2 + $0x18] sm:$0xff] %v300
  %333 = vst [vmem:[#allocation2 + $0x20] sm:$0xff] %v301
  %334 = vst [vmem:[#allocation2 + $0x28] sm:$0xff] %v302
  %335 = vst [vmem:[#allocation2 + $0x30] sm:$0xff] %v303
  %336 = vst [vmem:[#allocation2 + $0x38] sm:$0xff] %v304
  %337 = vst [vmem:[#allocation2 + $0x40] sm:$0xff] %v305
  %338 = vst [vmem:[#allocation2 + $0x48] sm:$0xff] %v306
  %339 = vst [vmem:[#allocation2 + $0x50] sm:$0xff] %v307
  %340 = vst [vmem:[#allocation2 + $0x58] sm:$0xff] %v308
  %341 = vst [vmem:[#allocation2 + $0x60] sm:$0xff] %v309
  %342 = vst [vmem:[#allocation2 + $0x68] sm:$0xff] %v310
  %343 = vst [vmem:[#allocation2 + $0x70] sm:$0xff] %v311
  %344 = vst [vmem:[#allocation2 + $0x78] sm:$0xff] %v312
  %345 = vst [vmem:[#allocation2 + $0x80] sm:$0xff] %v313
  %346 = vst [vmem:[#allocation2 + $0x88] sm:$0xff] %v314
  %347 = vst [vmem:[#allocation2 + $0x90] sm:$0xff] %v315
  %348 = vst [vmem:[#allocation2 + $0x98] sm:$0xff] %v316
  %349 = vst [vmem:[#allocation2 + $0xa0] sm:$0xff] %v317
  %350 = vst [vmem:[#allocation2 + $0xa8] sm:$0xff] %v318
  %351 = vst [vmem:[#allocation2 + $0xb0] sm:$0xff] %v319
  %352 = vst [vmem:[#allocation2 + $0xb8] sm:$0xff] %v320
  %353 = vst [vmem:[#allocation2 + $0xc0] sm:$0xff] %v321
  %354 = vst [vmem:[#allocation2 + $0xc8] sm:$0xff] %v322
  %355 = vst [vmem:[#allocation2 + $0xd0] sm:$0xff] %v323
  %356 = vst [vmem:[#allocation2 + $0xd8] sm:$0xff] %v324
  %357 = vst [vmem:[#allocation2 + $0xe0] sm:$0xff] %v325
  %358 = vst [vmem:[#allocation2 + $0xe8] sm:$0xff] %v326
  %359 = vst [vmem:[#allocation2 + $0xf0] sm:$0xff] %v327
  %360 = vst [vmem:[#allocation2 + $0xf8] sm:$0xff] %v328
  // Predicated region
  $region18: #{dominant_forward.14} parent=0 // pred_check
    %p361 = pneg %p14
  $region19: #{dominant_forward.14} parent=0 // pred_check_branch
    %363 = sbr.rel (%p361) target = $region21
  $region20: #{dominant_forward.14} parent=0 // pred_region
    %v364 = vld [vmem:[#allocation2] sm:$0xff]
    %v365 = vld [vmem:[#allocation2 + $0x8] sm:$0xff]
    %v366 = vld [vmem:[#allocation2 + $0x10] sm:$0xff]
    %v367 = vld [vmem:[#allocation2 + $0x18] sm:$0xff]
    %v368 = vld [vmem:[#allocation2 + $0x20] sm:$0xff]
    %v369 = vld [vmem:[#allocation2 + $0x28] sm:$0xff]
    %v370 = vld [vmem:[#allocation2 + $0x30] sm:$0xff]
    %v371 = vld [vmem:[#allocation2 + $0x38] sm:$0xff]
    %v372 = vld [vmem:[#allocation2 + $0x40] sm:$0xff]
    %v373 = vld [vmem:[#allocation2 + $0x48] sm:$0xff]
    %v374 = vld [vmem:[#allocation2 + $0x50] sm:$0xff]
    %v375 = vld [vmem:[#allocation2 + $0x58] sm:$0xff]
    %v376 = vld [vmem:[#allocation2 + $0x60] sm:$0xff]
    %v377 = vld [vmem:[#allocation2 + $0x68] sm:$0xff]
    %v378 = vld [vmem:[#allocation2 + $0x70] sm:$0xff]
    %v379 = vld [vmem:[#allocation2 + $0x78] sm:$0xff]
    %v380 = vld [vmem:[#allocation2 + $0x80] sm:$0xff]
    %v381 = vld [vmem:[#allocation2 + $0x88] sm:$0xff]
    %v382 = vld [vmem:[#allocation2 + $0x90] sm:$0xff]
    %v383 = vld [vmem:[#allocation2 + $0x98] sm:$0xff]
    %v384 = vld [vmem:[#allocation2 + $0xa0] sm:$0xff]
    %v385 = vld [vmem:[#allocation2 + $0xa8] sm:$0xff]
    %v386 = vld [vmem:[#allocation2 + $0xb0] sm:$0xff]
    %v387 = vld [vmem:[#allocation2 + $0xb8] sm:$0xff]
    %v388 = vld [vmem:[#allocation2 + $0xc0] sm:$0xff]
    %v389 = vld [vmem:[#allocation2 + $0xc8] sm:$0xff]
    %v390 = vld [vmem:[#allocation2 + $0xd0] sm:$0xff]
    %v391 = vld [vmem:[#allocation2 + $0xd8] sm:$0xff]
    %v392 = vld [vmem:[#allocation2 + $0xe0] sm:$0xff]
    %v393 = vld [vmem:[#allocation2 + $0xe8] sm:$0xff]
    %v394 = vld [vmem:[#allocation2 + $0xf0] sm:$0xff]
    %v395 = vld [vmem:[#allocation2 + $0xf8] sm:$0xff]
    %v396 = vld [vmem:[%s2] sm:$0x3]
    %v398 = vlaneseq
    %v399 = vshrl.u32 %v398, 7
    %v400 = vsub.s32 0, %v399
    %v401 = vrot.slane %v396, %v400
    %v402 = vlaneseq
    %v403 = vshrl.u32 %v402, 7
    %v404 = vsub.s32 1, %v403
    %v405 = vrot.slane %v396, %v404
    %v408 = vadd.f32 %v364, %v401
    %v409 = vadd.f32 %v365, %v405
    %v410 = vadd.f32 %v366, %v401
    %v411 = vadd.f32 %v367, %v405
    %v412 = vadd.f32 %v368, %v401
    %v413 = vadd.f32 %v369, %v405
    %v414 = vadd.f32 %v370, %v401
    %v415 = vadd.f32 %v371, %v405
    %v416 = vadd.f32 %v372, %v401
    %v417 = vadd.f32 %v373, %v405
    %v418 = vadd.f32 %v374, %v401
    %v419 = vadd.f32 %v375, %v405
    %v420 = vadd.f32 %v376, %v401
    %v421 = vadd.f32 %v377, %v405
    %v422 = vadd.f32 %v378, %v401
    %v423 = vadd.f32 %v379, %v405
    %v424 = vadd.f32 %v380, %v401
    %v425 = vadd.f32 %v381, %v405
    %v426 = vadd.f32 %v382, %v401
    %v427 = vadd.f32 %v383, %v405
    %v428 = vadd.f32 %v384, %v401
    %v429 = vadd.f32 %v385, %v405
    %v430 = vadd.f32 %v386, %v401
    %v431 = vadd.f32 %v387, %v405
    %v432 = vadd.f32 %v388, %v401
    %v433 = vadd.f32 %v389, %v405
    %v434 = vadd.f32 %v390, %v401
    %v435 = vadd.f32 %v391, %v405
    %v436 = vadd.f32 %v392, %v401
    %v437 = vadd.f32 %v393, %v405
    %v438 = vadd.f32 %v394, %v401
    %v439 = vadd.f32 %v395, %v405
    %v440 = vmax.f32 %v408, 0.0
    %v441 = vmax.f32 %v409, 0.0
    %v442 = vmax.f32 %v410, 0.0
    %v443 = vmax.f32 %v411, 0.0
    %v444 = vmax.f32 %v412, 0.0
    %v445 = vmax.f32 %v413, 0.0
    %v446 = vmax.f32 %v414, 0.0
    %v447 = vmax.f32 %v415, 0.0
    %v448 = vmax.f32 %v416, 0.0
    %v449 = vmax.f32 %v417, 0.0
    %v450 = vmax.f32 %v418, 0.0
    %v451 = vmax.f32 %v419, 0.0
    %v452 = vmax.f32 %v420, 0.0
    %v453 = vmax.f32 %v421, 0.0
    %v454 = vmax.f32 %v422, 0.0
    %v455 = vmax.f32 %v423, 0.0
    %v456 = vmax.f32 %v424, 0.0
    %v457 = vmax.f32 %v425, 0.0
    %v458 = vmax.f32 %v426, 0.0
    %v459 = vmax.f32 %v427, 0.0
    %v460 = vmax.f32 %v428, 0.0
    %v461 = vmax.f32 %v429, 0.0
    %v462 = vmax.f32 %v430, 0.0
    %v463 = vmax.f32 %v431, 0.0
    %v464 = vmax.f32 %v432, 0.0
    %v465 = vmax.f32 %v433, 0.0
    %v466 = vmax.f32 %v434, 0.0
    %v467 = vmax.f32 %v435, 0.0
    %v468 = vmax.f32 %v436, 0.0
    %v469 = vmax.f32 %v437, 0.0
    %v470 = vmax.f32 %v438, 0.0
    %v471 = vmax.f32 %v439, 0.0
    %472 = vst [vmem:[%s3] sm:$0xff] %v440
    %473 = vst [vmem:[%s3 + $0x8] sm:$0xff] %v441
    %474 = vst [vmem:[%s3 + $0x10] sm:$0xff] %v442
    %475 = vst [vmem:[%s3 + $0x18] sm:$0xff] %v443
    %476 = vst [vmem:[%s3 + $0x20] sm:$0xff] %v444
    %477 = vst [vmem:[%s3 + $0x28] sm:$0xff] %v445
    %478 = vst [vmem:[%s3 + $0x30] sm:$0xff] %v446
    %479 = vst [vmem:[%s3 + $0x38] sm:$0xff] %v447
    %480 = vst [vmem:[%s3 + $0x40] sm:$0xff] %v448
    %481 = vst [vmem:[%s3 + $0x48] sm:$0xff] %v449
    %482 = vst [vmem:[%s3 + $0x50] sm:$0xff] %v450
    %483 = vst [vmem:[%s3 + $0x58] sm:$0xff] %v451
    %484 = vst [vmem:[%s3 + $0x60] sm:$0xff] %v452
    %485 = vst [vmem:[%s3 + $0x68] sm:$0xff] %v453
    %486 = vst [vmem:[%s3 + $0x70] sm:$0xff] %v454
    %487 = vst [vmem:[%s3 + $0x78] sm:$0xff] %v455
    %488 = vst [vmem:[%s3 + $0x80] sm:$0xff] %v456
    %489 = vst [vmem:[%s3 + $0x88] sm:$0xff] %v457
    %490 = vst [vmem:[%s3 + $0x90] sm:$0xff] %v458
    %491 = vst [vmem:[%s3 + $0x98] sm:$0xff] %v459
    %492 = vst [vmem:[%s3 + $0xa0] sm:$0xff] %v460
    %493 = vst [vmem:[%s3 + $0xa8] sm:$0xff] %v461
    %494 = vst [vmem:[%s3 + $0xb0] sm:$0xff] %v462
    %495 = vst [vmem:[%s3 + $0xb8] sm:$0xff] %v463
    %496 = vst [vmem:[%s3 + $0xc0] sm:$0xff] %v464
    %497 = vst [vmem:[%s3 + $0xc8] sm:$0xff] %v465
    %498 = vst [vmem:[%s3 + $0xd0] sm:$0xff] %v466
    %499 = vst [vmem:[%s3 + $0xd8] sm:$0xff] %v467
    %500 = vst [vmem:[%s3 + $0xe0] sm:$0xff] %v468
    %501 = vst [vmem:[%s3 + $0xe8] sm:$0xff] %v469
    %502 = vst [vmem:[%s3 + $0xf0] sm:$0xff] %v470
    %503 = vst [vmem:[%s3 + $0xf8] sm:$0xff] %v471
  $region21: #{dominant_forward.14} parent=0 // pred_fallthru
    _
  // Predicated region
  $region22: #{dominant_forward.14} parent=0 // pred_check
    _
  $region23: #{dominant_forward.14} parent=0 // pred_check_branch
    %505 = sbr.rel (0) target = $region25
  $region24: #{dominant_forward.14} parent=0 // pred_region
    _
  $region25: #{dominant_forward.14} parent=0 // pred_fallthru
    _
  // Predicated region
  $region26: #{dominant_forward.14} parent=0 // pred_check
    _
  $region27: #{dominant_forward.14} parent=0 // pred_check_branch
    %507 = sbr.rel (0) target = $region29
  $region28: #{dominant_forward.14} parent=0 // pred_region
    _
  $region29: #{dominant_forward.14} parent=0 // pred_fallthru
    _

// kernel: dominant_forward.17
$region0: #{dominant_forward.17}
  #allocation0 [shape = 'u32[]', space=smem, size = 0x4, offset = 0x4, fixed_abs, tag = 'smem constant byte address 0x4 - core index']
  #allocation1 [shape = 'u32[144,128]{1,0:T(1,128)}', space=vmem, size = 0x12000, scoped, tag = 'internal scratch']
  %s0 = inlined_call_operand.vmem [shape: f32[128,128], index: 0, kind: input, shape index: {}]
  %s1 = inlined_call_operand.vmem [shape: f32[128,128], index: 1, kind: input, shape index: {}]
  %s2 = inlined_call_operand.vmem [shape: f32[128,128], index: 2, kind: output, shape index: {}]
  %s3 = sld [smem:[#allocation0]]
  $region18: #{dominant_forward.17} parent=0
    _
  %s5 = ssub.s32 1, %s3
  %s6 = scalar_select 0, %s5, %s3
  // Predicated region
  $region2: #{dominant_forward.17} parent=0 // pred_check
    _
  $region3: #{dominant_forward.17} parent=0 // pred_check_branch
    %8 = sbr.rel (0) target = $region5
  $region4: #{dominant_forward.17} parent=0 // pred_region
    _
  $region5: #{dominant_forward.17} parent=0 // pred_fallthru
    _
  // Predicated region
  $region6: #{dominant_forward.17} parent=0 // pred_check
    _
  $region7: #{dominant_forward.17} parent=0 // pred_check_branch
    %10 = sbr.rel (0) target = $region9
  $region8: #{dominant_forward.17} parent=0 // pred_region
    _
  $region9: #{dominant_forward.17} parent=0 // pred_fallthru
    _
  %s11 = smul.u32 0, 128
  %s12 = sshra.s32 %s11, 7
  %s13 = sand.u32 %s11, 127
  %s14 = scalar_lea.vmem %s1, %s12
  %v15 = vld [vmem:[%s14] sm:$0xff]
  %v16 = vld [vmem:[%s14 + $0x8] sm:$0xff]
  %v17 = vld [vmem:[%s14 + $0x10] sm:$0xff]
  %v18 = vld [vmem:[%s14 + $0x18] sm:$0xff]
  %v19 = vld [vmem:[%s14 + $0x20] sm:$0xff]
  %v20 = vld [vmem:[%s14 + $0x28] sm:$0xff]
  %v21 = vld [vmem:[%s14 + $0x30] sm:$0xff]
  %v22 = vld [vmem:[%s14 + $0x38] sm:$0xff]
  %v23 = vld [vmem:[%s14 + $0x40] sm:$0xff]
  %v24 = vld [vmem:[%s14 + $0x48] sm:$0xff]
  %v25 = vld [vmem:[%s14 + $0x50] sm:$0xff]
  %v26 = vld [vmem:[%s14 + $0x58] sm:$0xff]
  %v27 = vld [vmem:[%s14 + $0x60] sm:$0xff]
  %v28 = vld [vmem:[%s14 + $0x68] sm:$0xff]
  %v29 = vld [vmem:[%s14 + $0x70] sm:$0xff]
  %v30 = vld [vmem:[%s14 + $0x78] sm:$0xff]
  %v31 = vld [vmem:[%s0] sm:$0xff]
  %v32 = vld [vmem:[%s0 + $0x8] sm:$0xff]
  %v33 = vld [vmem:[%s0 + $0x10] sm:$0xff]
  %v34 = vld [vmem:[%s0 + $0x18] sm:$0xff]
  %v35 = vld [vmem:[%s0 + $0x20] sm:$0xff]
  %v36 = vld [vmem:[%s0 + $0x28] sm:$0xff]
  %v37 = vld [vmem:[%s0 + $0x30] sm:$0xff]
  %v38 = vld [vmem:[%s0 + $0x38] sm:$0xff]
  %v39 = vld [vmem:[%s0 + $0x40] sm:$0xff]
  %v40 = vld [vmem:[%s0 + $0x48] sm:$0xff]
  %v41 = vld [vmem:[%s0 + $0x50] sm:$0xff]
  %v42 = vld [vmem:[%s0 + $0x58] sm:$0xff]
  %v43 = vld [vmem:[%s0 + $0x60] sm:$0xff]
  %v44 = vld [vmem:[%s0 + $0x68] sm:$0xff]
  %v45 = vld [vmem:[%s0 + $0x70] sm:$0xff]
  %v46 = vld [vmem:[%s0 + $0x78] sm:$0xff]
  %47 = vmatprep.subr.mxu0 0.0
  %48 = vmatpush1.msra.mxu0 %v15
  %49 = vmatprep.subr.mxu0 0.0
  %50 = vmatpush1.msra.mxu0 %v16
  %51 = vmatprep.subr.mxu0 0.0
  %52 = vmatpush1.msra.mxu0 %v17
  %53 = vmatprep.subr.mxu0 0.0
  %54 = vmatpush1.msra.mxu0 %v18
  %55 = vmatprep.subr.mxu0 0.0
  %56 = vmatpush1.msra.mxu0 %v19
  %57 = vmatprep.subr.mxu0 0.0
  %58 = vmatpush1.msra.mxu0 %v20
  %59 = vmatprep.subr.mxu0 0.0
  %60 = vmatpush1.msra.mxu0 %v21
  %61 = vmatprep.subr.mxu0 0.0
  %62 = vmatpush1.msra.mxu0 %v22
  %63 = vmatprep.subr.mxu0 0.0
  %64 = vmatpush1.msra.mxu0 %v23
  %65 = vmatprep.subr.mxu0 0.0
  %66 = vmatpush1.msra.mxu0 %v24
  %67 = vmatprep.subr.mxu0 0.0
  %68 = vmatpush1.msra.mxu0 %v25
  %69 = vmatprep.subr.mxu0 0.0
  %70 = vmatpush1.msra.mxu0 %v26
  %71 = vmatprep.subr.mxu0 0.0
  %72 = vmatpush1.msra.mxu0 %v27
  %73 = vmatprep.subr.mxu0 0.0
  %74 = vmatpush1.msra.mxu0 %v28
  %75 = vmatprep.subr.mxu0 0.0
  %76 = vmatpush1.msra.mxu0 %v29
  %77 = vmatprep.subr.mxu0 0.0
  %78 = vmatpush1.msra.mxu0 %v30
  %79 = vmatprep.subr.mxu0 0.0
  %80 = vmatpush1.msra.mxu0 0.0
  %81 = vmatprep.subr.mxu0 0.0
  %82 = vmatpush1.msra.mxu0 0.0
  %83 = vmatprep.subr.mxu0 0.0
  %84 = vmatpush1.msra.mxu0 0.0
  %85 = vmatprep.subr.mxu0 0.0
  %86 = vmatpush1.msra.mxu0 0.0
  %87 = vmatprep.subr.mxu0 0.0
  %88 = vmatpush1.msra.mxu0 0.0
  %89 = vmatprep.subr.mxu0 0.0
  %90 = vmatpush1.msra.mxu0 0.0
  %91 = vmatprep.subr.mxu0 0.0
  %92 = vmatpush1.msra.mxu0 0.0
  %93 = vmatprep.subr.mxu0 0.0
  %94 = vmatpush1.msra.mxu0 0.0
  %95 = vmatprep.subr.mxu0 0.0
  %96 = vmatpush1.msra.mxu0 0.0
  %97 = vmatprep.subr.mxu0 0.0
  %98 = vmatpush1.msra.mxu0 0.0
  %99 = vmatprep.subr.mxu0 0.0
  %100 = vmatpush1.msra.mxu0 0.0
  %101 = vmatprep.subr.mxu0 0.0
  %102 = vmatpush1.msra.mxu0 0.0
  %103 = vmatprep.subr.mxu0 0.0
  %104 = vmatpush1.msra.mxu0 0.0
  %105 = vmatprep.subr.mxu0 0.0
  %106 = vmatpush1.msra.mxu0 0.0
  %107 = vmatprep.subr.mxu0 0.0
  %108 = vmatpush1.msra.mxu0 0.0
  %109 = vmatprep.subr.mxu0 0.0
  %110 = vmatpush1.msra.mxu0 0.0
  %111 = vmatprep.mubr.f32.mxu0 0.0
  %112 = vmatmul.mubr.f32.gmra.mrb[0].mxu0 %v31
  %v113 = vpop.f32.mrb[0].mxu0
  %v114 = vadd.f32 0.0, %v113
  %v115 = vpop.f32.mrb[0].mxu0
  %116 = vmatprep.mubr.f32.mxu0 0.0
  %117 = vmatmul.mubr.f32.gmra.mrb[0].mxu0 %v32
  %v118 = vpop.f32.mrb[0].mxu0
  %v119 = vadd.f32 0.0, %v118
  %v120 = vpop.f32.mrb[0].mxu0
  %121 = vmatprep.mubr.f32.mxu0 0.0
  %122 = vmatmul.mubr.f32.gmra.mrb[0].mxu0 %v33
  %v123 = vpop.f32.mrb[0].mxu0
  %v124 = vadd.f32 0.0, %v123
  %v125 = vpop.f32.mrb[0].mxu0
  %126 = vmatprep.mubr.f32.mxu0 0.0
  %127 = vmatmul.mubr.f32.gmra.mrb[0].mxu0 %v34
  %v128 = vpop.f32.mrb[0].mxu0
  %v129 = vadd.f32 0.0, %v128
  %v130 = vpop.f32.mrb[0].mxu0
  %131 = vmatprep.mubr.f32.mxu0 0.0
  %132 = vmatmul.mubr.f32.gmra.mrb[0].mxu0 %v35
  %v133 = vpop.f32.mrb[0].mxu0
  %v134 = vadd.f32 0.0, %v133
  %v135 = vpop.f32.mrb[0].mxu0
  %136 = vmatprep.mubr.f32.mxu0 0.0
  %137 = vmatmul.mubr.f32.gmra.mrb[0].mxu0 %v36
  %v138 = vpop.f32.mrb[0].mxu0
  %v139 = vadd.f32 0.0, %v138
  %v140 = vpop.f32.mrb[0].mxu0
  %141 = vmatprep.mubr.f32.mxu0 0.0
  %142 = vmatmul.mubr.f32.gmra.mrb[0].mxu0 %v37
  %v143 = vpop.f32.mrb[0].mxu0
  %v144 = vadd.f32 0.0, %v143
  %v145 = vpop.f32.mrb[0].mxu0
  %146 = vmatprep.mubr.f32.mxu0 0.0
  %147 = vmatmul.mubr.f32.gmra.mrb[0].mxu0 %v38
  %v148 = vpop.f32.mrb[0].mxu0
  %v149 = vadd.f32 0.0, %v148
  %v150 = vpop.f32.mrb[0].mxu0
  %151 = vmatprep.mubr.f32.mxu0 0.0
  %152 = vmatmul.mubr.f32.gmra.mrb[0].mxu0 %v39
  %v153 = vpop.f32.mrb[0].mxu0
  %v154 = vadd.f32 0.0, %v153
  %v155 = vpop.f32.mrb[0].mxu0
  %156 = vmatprep.mubr.f32.mxu0 0.0
  %157 = vmatmul.mubr.f32.gmra.mrb[0].mxu0 %v40
  %v158 = vpop.f32.mrb[0].mxu0
  %v159 = vadd.f32 0.0, %v158
  %v160 = vpop.f32.mrb[0].mxu0
  %161 = vmatprep.mubr.f32.mxu0 0.0
  %162 = vmatmul.mubr.f32.gmra.mrb[0].mxu0 %v41
  %v163 = vpop.f32.mrb[0].mxu0
  %v164 = vadd.f32 0.0, %v163
  %v165 = vpop.f32.mrb[0].mxu0
  %166 = vmatprep.mubr.f32.mxu0 0.0
  %167 = vmatmul.mubr.f32.gmra.mrb[0].mxu0 %v42
  %v168 = vpop.f32.mrb[0].mxu0
  %v169 = vadd.f32 0.0, %v168
  %v170 = vpop.f32.mrb[0].mxu0
  %171 = vmatprep.mubr.f32.mxu0 0.0
  %172 = vmatmul.mubr.f32.gmra.mrb[0].mxu0 %v43
  %v173 = vpop.f32.mrb[0].mxu0
  %v174 = vadd.f32 0.0, %v173
  %v175 = vpop.f32.mrb[0].mxu0
  %176 = vmatprep.mubr.f32.mxu0 0.0
  %177 = vmatmul.mubr.f32.gmra.mrb[0].mxu0 %v44
  %v178 = vpop.f32.mrb[0].mxu0
  %v179 = vadd.f32 0.0, %v178
  %v180 = vpop.f32.mrb[0].mxu0
  %181 = vmatprep.mubr.f32.mxu0 0.0
  %182 = vmatmul.mubr.f32.gmra.mrb[0].mxu0 %v45
  %v183 = vpop.f32.mrb[0].mxu0
  %v184 = vadd.f32 0.0, %v183
  %v185 = vpop.f32.mrb[0].mxu0
  %186 = vmatprep.mubr.f32.mxu0 0.0
  %187 = vmatmul.mubr.f32.gmra.mrb[0].mxu0 %v46
  %v188 = vpop.f32.mrb[0].mxu0
  %v189 = vadd.f32 0.0, %v188
  %v190 = vpop.f32.mrb[0].mxu0
  %191 = vdwg.mxu0
  %192 = vst [vmem:[%s2] sm:$0xff] %v114
  %193 = vst [vmem:[%s2 + $0x8] sm:$0xff] %v119
  %194 = vst [vmem:[%s2 + $0x10] sm:$0xff] %v124
  %195 = vst [vmem:[%s2 + $0x18] sm:$0xff] %v129
  %196 = vst [vmem:[%s2 + $0x20] sm:$0xff] %v134
  %197 = vst [vmem:[%s2 + $0x28] sm:$0xff] %v139
  %198 = vst [vmem:[%s2 + $0x30] sm:$0xff] %v144
  %199 = vst [vmem:[%s2 + $0x38] sm:$0xff] %v149
  %200 = vst [vmem:[%s2 + $0x40] sm:$0xff] %v154
  %201 = vst [vmem:[%s2 + $0x48] sm:$0xff] %v159
  %202 = vst [vmem:[%s2 + $0x50] sm:$0xff] %v164
  %203 = vst [vmem:[%s2 + $0x58] sm:$0xff] %v169
  %204 = vst [vmem:[%s2 + $0x60] sm:$0xff] %v174
  %205 = vst [vmem:[%s2 + $0x68] sm:$0xff] %v179
  %206 = vst [vmem:[%s2 + $0x70] sm:$0xff] %v184
  %207 = vst [vmem:[%s2 + $0x78] sm:$0xff] %v189
  // Predicated region
  $region10: #{dominant_forward.17} parent=0 // pred_check
    _
  $region11: #{dominant_forward.17} parent=0 // pred_check_branch
    %209 = sbr.rel (0) target = $region13
  $region12: #{dominant_forward.17} parent=0 // pred_region
    _
  $region13: #{dominant_forward.17} parent=0 // pred_fallthru
    _
  // Predicated region
  $region14: #{dominant_forward.17} parent=0 // pred_check
    _
  $region15: #{dominant_forward.17} parent=0 // pred_check_branch
    %211 = sbr.rel (0) target = $region17
  $region16: #{dominant_forward.17} parent=0 // pred_region
    _
  $region17: #{dominant_forward.17} parent=0 // pred_fallthru
    _

</llo_original>
